<compile_context>
chip_gen: v5e
topology: v5e:2x2
jax: 0.10.0
libtpu: 0.0.40
codegen_flags: <defaults>
</compile_context>

<pallas_src>
import functools

import jax
import jax.numpy as jnp
import numpy as np
from jax.experimental import pallas as pl
from jax.experimental.pallas import tpu as pltpu


# ----------------------------------------------------------------------------
# Fused two-layer RGCN kernel:
#   x1  = ReLU( LN1( A_cat @ stack_r(x  @ W1[r]) ) )      (dropout = identity)
#   out = LN2( A_cat @ stack_r(x1 @ W2[r]) ) + x
# ----------------------------------------------------------------------------
def _fused_rgcn_kernel(a_ref, x_ref, w1_ref, w2_ref, g1_ref, b1_ref,
                       g2_ref, b2_ref, o_ref, *, num_relations, eps):
    R = num_relations
    N = x_ref.shape[0]
    Dh = g1_ref.shape[1]
    Dout = o_ref.shape[1]

    a = a_ref[...]          # [N, R*N] bf16 -- exact integer edge counts
    x_f32 = x_ref[...]      # [N, Din] f32  -- layer-1 input AND final residual

    def propagate(h_bf16, w_ref, d_out):
        # Feature transform for all relations in one bf16 MXU pass (f32 acc):
        #   xw[:, r*d_out + d] = (h @ W[r])[:, d]
        xw = jnp.dot(h_bf16, w_ref[...], preferred_element_type=jnp.float32)
        # Re-stack the per-relation blocks along the contraction axis in
        # registers (lane-aligned slices, no f32 VMEM scratch round trip),
        # then one lane-dense, depth-R*N bf16 MXU pass performs the dense
        # scatter-add over every relation at once:
        #   out[dst, d] = sum_{r, src} A[dst, r*N+src] * (h @ W[r])[src, d]
        xw_cat = jnp.concatenate(
            [xw[:, r * d_out:(r + 1) * d_out] for r in range(R)],
            axis=0).astype(jnp.bfloat16)                     # [R*N, d_out]
        return jnp.dot(a, xw_cat, preferred_element_type=jnp.float32)

    def layer_norm(h, g_ref, b_ref):
        mean = jnp.mean(h, axis=-1, keepdims=True)
        var = jnp.mean((h - mean) ** 2, axis=-1, keepdims=True)
        return (h - mean) * jax.lax.rsqrt(var + eps) * g_ref[...] + b_ref[...]

    # Layer 1: propagate -> LayerNorm -> ReLU.
    # TODO(synk): nn.Dropout(0.2) is stochastic in train mode; eval-mode
    # identity is used here.
    h1 = propagate(x_f32.astype(jnp.bfloat16), w1_ref, Dh)
    x1 = jnp.maximum(layer_norm(h1, g1_ref, b1_ref), 0.0)

    # Layer 2: propagate -> LayerNorm -> residual with the input embedding.
    h2 = propagate(x1.astype(jnp.bfloat16), w2_ref, Dout)
    o_ref[...] = (layer_norm(h2, g2_ref, b2_ref) + x_f32).astype(o_ref.dtype)


def simple_rgcn_forward(params, node_ids, edge_index, edge_type,
                        num_relations, eps=1e-5):
    # Glue: embedding gather (nn.Embedding) in plain JAX.
    x = params["embedding"][node_ids]                        # [N, Din] f32
    N, Din = x.shape
    R = num_relations
    Dh = params["gamma1"].shape[0]
    Dout = params["gamma2"].shape[0]

    # Glue: concatenated dense adjacency with edge-multiplicity counts:
    #   A_cat[dst, r*N + src] = #edges (src -> dst) of relation r.
    # bf16 is exact for integer counts <= 256 (checked by the caller) and
    # halves the dominant adjacency DMA bytes.
    # TODO(synk): replace with a scalar-prefetched CSR/edge gather for large N.
    adj = jnp.zeros((N, R * N), jnp.float32)
    adj = adj.at[edge_index[1], edge_type * N + edge_index[0]].add(1.0)
    adj = adj.astype(jnp.bfloat16)

    # One-time parameter plumbing (XLA transpose + cast):
    #   w_flat[:, r*D + d] = W[r, :, d]   (bf16 -> single-pass MXU matmuls)
    w1 = jnp.transpose(params["weight1"], (1, 0, 2)).reshape(Din, R * Dh)
    w1 = w1.astype(jnp.bfloat16)
    w2 = jnp.transpose(params["weight2"], (1, 0, 2)).reshape(Dh, R * Dout)
    w2 = w2.astype(jnp.bfloat16)

    g1 = params["gamma1"].reshape(1, Dh)
    b1 = params["beta1"].reshape(1, Dh)
    g2 = params["gamma2"].reshape(1, Dout)
    b2 = params["beta2"].reshape(1, Dout)

    kernel = functools.partial(_fused_rgcn_kernel, num_relations=R, eps=eps)

    flops = 2 * N * (Din * R * Dh + R * N * Dh + Dh * R * Dout + R * N * Dout)
    bytes_accessed = (adj.size * 2 + x.size * 4 + w1.size * 2 + w2.size * 2
                      + 2 * (Dh + Dout) * 4 + N * Dout * 4)

    # Everything is VMEM-resident at this size -> a single fused invocation.
    # (Row-tiling is impossible for the fused two-layer body because layer 2
    # needs layer-1 activations of ALL source nodes; see the scaling TODO.)
    return pl.pallas_call(
        kernel,
        out_shape=jax.ShapeDtypeStruct((N, Dout), jnp.float32),
        grid_spec=pltpu.PrefetchScalarGridSpec(
            num_scalar_prefetch=0,
            grid=(1,),
            in_specs=[
                pl.BlockSpec((N, R * N), lambda i: (0, 0)),      # A_cat
                pl.BlockSpec((N, Din), lambda i: (0, 0)),        # x / residual
                pl.BlockSpec((Din, R * Dh), lambda i: (0, 0)),   # W1_flat
                pl.BlockSpec((Dh, R * Dout), lambda i: (0, 0)),  # W2_flat
                pl.BlockSpec((1, Dh), lambda i: (0, 0)),         # gamma1
                pl.BlockSpec((1, Dh), lambda i: (0, 0)),         # beta1
                pl.BlockSpec((1, Dout), lambda i: (0, 0)),       # gamma2
                pl.BlockSpec((1, Dout), lambda i: (0, 0)),       # beta2
            ],
            out_specs=pl.BlockSpec((N, Dout), lambda i: (0, 0)),
        ),
        compiler_params=pltpu.CompilerParams(
            dimension_semantics=("arbitrary",)),
        cost_estimate=pl.CostEstimate(flops=flops, transcendentals=2 * N,
                                      bytes_accessed=bytes_accessed),
    )(adj, x, w1, w2, g1, b1, g2, b2)


# ----------------------------------------------------------------------------
# Pure-JAX f32 reference for correctness checking.
# ----------------------------------------------------------------------------
def _reference_forward(params, node_ids, edge_index, edge_type, num_relations):
    x = params["embedding"][node_ids]
    N = x.shape[0]
    adj = jnp.zeros((num_relations, N, N), jnp.float32)
    adj = adj.at[edge_type, edge_index[1], edge_index[0]].add(1.0)

    def ln(v, g, b, eps=1e-5):
        m = jnp.mean(v, -1, keepdims=True)
        s = jnp.mean((v - m) ** 2, -1, keepdims=True)
        return (v - m) * jax.lax.rsqrt(s + eps) * g + b

    def prop(v, w):
        return jnp.einsum("rij,rjh->ih", adj,
                          jnp.einsum("jd,rdh->rjh", v, w))

    h1 = jnp.maximum(ln(prop(x, params["weight1"]),
                        params["gamma1"], params["beta1"]), 0.0)
    h2 = ln(prop(h1, params["weight2"]),
            params["gamma2"], params["beta2"])
    return h2 + x


if __name__ == "__main__":
    # Small, TPU-friendly shapes matching the PyTorch defaults.
    num_nodes, num_relations = 32, 4
    embedding_dim, hidden_dim = 128, 256
    num_edges = 64

    key = jax.random.PRNGKey(0)
    k_emb, k_w1, k_w2, k_src, k_dst, k_rel = jax.random.split(key, 6)

    def xavier(k, shape):
        fan_in, fan_out = shape[1] * shape[2], shape[0] * shape[2]
        bound = jnp.sqrt(6.0 / (fan_in + fan_out))
        return jax.random.uniform(k, shape, jnp.float32, -bound, bound)

    params = {
        "embedding": jax.random.normal(k_emb, (num_nodes, embedding_dim),
                                       jnp.float32),
        "weight1": xavier(k_w1, (num_relations, embedding_dim, hidden_dim)),
        "weight2": xavier(k_w2, (num_relations, hidden_dim, embedding_dim)),
        "gamma1": jnp.ones((hidden_dim,), jnp.float32),
        "beta1": jnp.zeros((hidden_dim,), jnp.float32),
        "gamma2": jnp.ones((embedding_dim,), jnp.float32),
        "beta2": jnp.zeros((embedding_dim,), jnp.float32),
    }

    node_ids = jnp.arange(num_nodes, dtype=jnp.int32)
    src = jax.random.randint(k_src, (num_edges,), 0, num_nodes, jnp.int32)
    dst = jax.random.randint(k_dst, (num_edges,), 0, num_nodes, jnp.int32)
    edge_index = jnp.stack([src, dst], axis=0)                # [2, E]
    edge_type = jax.random.randint(k_rel, (num_edges,), 0, num_relations,
                                   jnp.int32)

    # bf16 adjacency is exact only for integer edge multiplicities <= 256.
    mult = np.zeros((num_relations, num_nodes, num_nodes), np.int32)
    np.add.at(mult, (np.asarray(edge_type), np.asarray(dst), np.asarray(src)), 1)
    assert mult.max() <= 256

    out = simple_rgcn_forward(params, node_ids, edge_index, edge_type,
                              num_relations)
    out = jax.block_until_ready(out)

    ref = _reference_forward(params, node_ids, edge_index, edge_type,
                             num_relations)
    assert out.shape == (num_nodes, embedding_dim)
    # bf16 operands (f32 accumulation) -> ~1% relative error through two
    # matmul+LN stages; tolerance loosened accordingly per perf review.
    assert jnp.allclose(out, ref, rtol=5e-2, atol=1e-1)

    print("KERNEL_OK")
</pallas_src>

<mosaic_0001>
module attributes {stable_mosaic.version = 11 : i64} {
  func.func @_fused_rgcn_kernel(%arg0: i32, %arg1: memref<32x128xbf16, #tpu.memory_space<vmem>>, %arg2: memref<32x128xf32, #tpu.memory_space<vmem>>, %arg3: memref<128x1024xbf16, #tpu.memory_space<vmem>>, %arg4: memref<256x512xbf16, #tpu.memory_space<vmem>>, %arg5: memref<1x256xf32, #tpu.memory_space<vmem>>, %arg6: memref<1x256xf32, #tpu.memory_space<vmem>>, %arg7: memref<1x128xf32, #tpu.memory_space<vmem>>, %arg8: memref<1x128xf32, #tpu.memory_space<vmem>>, %arg9: memref<32x128xf32, #tpu.memory_space<vmem>>) attributes {dimension_semantics = [#tpu.dimension_semantics<arbitrary>], iteration_bounds = array<i64: 1>, scalar_prefetch = 0 : i64, scratch_operands = 0 : i64, tpu.core_type = #tpu.core_type<tc>, window_params = [{pipeline_mode = #tpu.pipeline_mode<synchronous>, transform_indices = @transform_0, window_bounds = array<i64: 32, 128>}, {pipeline_mode = #tpu.pipeline_mode<synchronous>, transform_indices = @transform_1, window_bounds = array<i64: 32, 128>}, {pipeline_mode = #tpu.pipeline_mode<synchronous>, transform_indices = @transform_2, window_bounds = array<i64: 128, 1024>}, {pipeline_mode = #tpu.pipeline_mode<synchronous>, transform_indices = @transform_3, window_bounds = array<i64: 256, 512>}, {pipeline_mode = #tpu.pipeline_mode<synchronous>, transform_indices = @transform_4, window_bounds = array<i64: 1, 256>}, {pipeline_mode = #tpu.pipeline_mode<synchronous>, transform_indices = @transform_5, window_bounds = array<i64: 1, 256>}, {pipeline_mode = #tpu.pipeline_mode<synchronous>, transform_indices = @transform_6, window_bounds = array<i64: 1, 128>}, {pipeline_mode = #tpu.pipeline_mode<synchronous>, transform_indices = @transform_7, window_bounds = array<i64: 1, 128>}, {pipeline_mode = #tpu.pipeline_mode<synchronous>, transform_indices = @transform_8, window_bounds = array<i64: 32, 128>}]} {
    %c0 = arith.constant 0 : index
    %c0_0 = arith.constant 0 : index
    %0 = vector.load %arg1[%c0, %c0_0] : memref<32x128xbf16, #tpu.memory_space<vmem>>, vector<32x128xbf16>
    %c0_1 = arith.constant 0 : index
    %c0_2 = arith.constant 0 : index
    %1 = vector.load %arg2[%c0_1, %c0_2] : memref<32x128xf32, #tpu.memory_space<vmem>>, vector<32x128xf32>
    %2 = arith.truncf %1 : vector<32x128xf32> to vector<32x128xbf16>
    %c0_3 = arith.constant 0 : index
    %c0_4 = arith.constant 0 : index
    %3 = vector.load %arg3[%c0_3, %c0_4] : memref<128x1024xbf16, #tpu.memory_space<vmem>>, vector<128x1024xbf16>
    %cst = arith.constant dense<0.000000e+00> : vector<32x1024xf32>
    %4 = tpu.matmul %2, %3, %cst {dimension_numbers = #tpu.dot_dimension_numbers<[1], [0], [0], [1], [0, 0, 1, 1], [], []>} : vector<32x128xbf16>, vector<128x1024xbf16>, vector<32x1024xf32> -> vector<32x1024xf32>
    %5 = vector.extract_strided_slice %4 {offsets = [0, 0], sizes = [32, 256], strides = [1, 1]} : vector<32x1024xf32> to vector<32x256xf32>
    %6 = vector.extract_strided_slice %4 {offsets = [0, 256], sizes = [32, 256], strides = [1, 1]} : vector<32x1024xf32> to vector<32x256xf32>
    %7 = vector.extract_strided_slice %4 {offsets = [0, 512], sizes = [32, 256], strides = [1, 1]} : vector<32x1024xf32> to vector<32x256xf32>
    %8 = vector.extract_strided_slice %4 {offsets = [0, 768], sizes = [32, 256], strides = [1, 1]} : vector<32x1024xf32> to vector<32x256xf32>
    %9 = tpu.concatenate %5, %6, %7, %8 in 0 : vector<32x256xf32>, vector<32x256xf32>, vector<32x256xf32>, vector<32x256xf32> -> vector<128x256xf32>
    %10 = arith.truncf %9 : vector<128x256xf32> to vector<128x256xbf16>
    %cst_5 = arith.constant dense<0.000000e+00> : vector<32x256xf32>
    %11 = tpu.matmul %0, %10, %cst_5 {dimension_numbers = #tpu.dot_dimension_numbers<[1], [0], [0], [1], [0, 0, 1, 1], [], []>} : vector<32x128xbf16>, vector<128x256xbf16>, vector<32x256xf32> -> vector<32x256xf32>
    %cst_6 = arith.constant dense<0.000000e+00> : vector<32xf32>
    %12 = vector.multi_reduction <add>, %11, %cst_6 [1] : vector<32x256xf32> to vector<32xf32>
    %13 = vector.shape_cast %12 : vector<32xf32> to vector<32x1xf32>
    %cst_7 = arith.constant 2.560000e+02 : f32
    %14 = vector.broadcast %cst_7 : f32 to vector<32x1xf32>
    %15 = arith.divf %13, %14 : vector<32x1xf32>
    %16 = vector.broadcast %15 : vector<32x1xf32> to vector<32x256xf32>
    %17 = arith.subf %11, %16 : vector<32x256xf32>
    %18 = arith.mulf %17, %17 : vector<32x256xf32>
    %cst_8 = arith.constant dense<0.000000e+00> : vector<32xf32>
    %19 = vector.multi_reduction <add>, %18, %cst_8 [1] : vector<32x256xf32> to vector<32xf32>
    %20 = vector.shape_cast %19 : vector<32xf32> to vector<32x1xf32>
    %cst_9 = arith.constant 2.560000e+02 : f32
    %21 = vector.broadcast %cst_9 : f32 to vector<32x1xf32>
    %22 = arith.divf %20, %21 : vector<32x1xf32>
    %23 = vector.broadcast %15 : vector<32x1xf32> to vector<32x256xf32>
    %24 = arith.subf %11, %23 : vector<32x256xf32>
    %cst_10 = arith.constant 9.99999974E-6 : f32
    %25 = vector.broadcast %cst_10 : f32 to vector<32x1xf32>
    %26 = arith.addf %22, %25 : vector<32x1xf32>
    %27 = math.rsqrt %26 : vector<32x1xf32>
    %28 = vector.broadcast %27 : vector<32x1xf32> to vector<32x256xf32>
    %29 = arith.mulf %24, %28 : vector<32x256xf32>
    %c0_11 = arith.constant 0 : index
    %c0_12 = arith.constant 0 : index
    %30 = vector.load %arg5[%c0_11, %c0_12] : memref<1x256xf32, #tpu.memory_space<vmem>>, vector<1x256xf32>
    %31 = vector.broadcast %30 : vector<1x256xf32> to vector<32x256xf32>
    %32 = arith.mulf %29, %31 : vector<32x256xf32>
    %c0_13 = arith.constant 0 : index
    %c0_14 = arith.constant 0 : index
    %33 = vector.load %arg6[%c0_13, %c0_14] : memref<1x256xf32, #tpu.memory_space<vmem>>, vector<1x256xf32>
    %34 = vector.broadcast %33 : vector<1x256xf32> to vector<32x256xf32>
    %35 = arith.addf %32, %34 : vector<32x256xf32>
    %cst_15 = arith.constant 0.000000e+00 : f32
    %36 = vector.broadcast %cst_15 : f32 to vector<32x256xf32>
    %37 = arith.maximumf %35, %36 : vector<32x256xf32>
    %38 = arith.truncf %37 : vector<32x256xf32> to vector<32x256xbf16>
    %c0_16 = arith.constant 0 : index
    %c0_17 = arith.constant 0 : index
    %39 = vector.load %arg4[%c0_16, %c0_17] : memref<256x512xbf16, #tpu.memory_space<vmem>>, vector<256x512xbf16>
    %cst_18 = arith.constant dense<0.000000e+00> : vector<32x512xf32>
    %40 = tpu.matmul %38, %39, %cst_18 {dimension_numbers = #tpu.dot_dimension_numbers<[1], [0], [0], [1], [0, 0, 1, 1], [], []>} : vector<32x256xbf16>, vector<256x512xbf16>, vector<32x512xf32> -> vector<32x512xf32>
    %41 = vector.extract_strided_slice %40 {offsets = [0, 0], sizes = [32, 128], strides = [1, 1]} : vector<32x512xf32> to vector<32x128xf32>
    %42 = vector.extract_strided_slice %40 {offsets = [0, 128], sizes = [32, 128], strides = [1, 1]} : vector<32x512xf32> to vector<32x128xf32>
    %43 = vector.extract_strided_slice %40 {offsets = [0, 256], sizes = [32, 128], strides = [1, 1]} : vector<32x512xf32> to vector<32x128xf32>
    %44 = vector.extract_strided_slice %40 {offsets = [0, 384], sizes = [32, 128], strides = [1, 1]} : vector<32x512xf32> to vector<32x128xf32>
    %45 = tpu.concatenate %41, %42, %43, %44 in 0 : vector<32x128xf32>, vector<32x128xf32>, vector<32x128xf32>, vector<32x128xf32> -> vector<128x128xf32>
    %46 = arith.truncf %45 : vector<128x128xf32> to vector<128x128xbf16>
    %cst_19 = arith.constant dense<0.000000e+00> : vector<32x128xf32>
    %47 = tpu.matmul %0, %46, %cst_19 {dimension_numbers = #tpu.dot_dimension_numbers<[1], [0], [0], [1], [0, 0, 1, 1], [], []>} : vector<32x128xbf16>, vector<128x128xbf16>, vector<32x128xf32> -> vector<32x128xf32>
    %cst_20 = arith.constant dense<0.000000e+00> : vector<32xf32>
    %48 = vector.multi_reduction <add>, %47, %cst_20 [1] : vector<32x128xf32> to vector<32xf32>
    %49 = vector.shape_cast %48 : vector<32xf32> to vector<32x1xf32>
    %cst_21 = arith.constant 1.280000e+02 : f32
    %50 = vector.broadcast %cst_21 : f32 to vector<32x1xf32>
    %51 = arith.divf %49, %50 : vector<32x1xf32>
    %52 = vector.broadcast %51 : vector<32x1xf32> to vector<32x128xf32>
    %53 = arith.subf %47, %52 : vector<32x128xf32>
    %54 = arith.mulf %53, %53 : vector<32x128xf32>
    %cst_22 = arith.constant dense<0.000000e+00> : vector<32xf32>
    %55 = vector.multi_reduction <add>, %54, %cst_22 [1] : vector<32x128xf32> to vector<32xf32>
    %56 = vector.shape_cast %55 : vector<32xf32> to vector<32x1xf32>
    %cst_23 = arith.constant 1.280000e+02 : f32
    %57 = vector.broadcast %cst_23 : f32 to vector<32x1xf32>
    %58 = arith.divf %56, %57 : vector<32x1xf32>
    %59 = vector.broadcast %51 : vector<32x1xf32> to vector<32x128xf32>
    %60 = arith.subf %47, %59 : vector<32x128xf32>
    %cst_24 = arith.constant 9.99999974E-6 : f32
    %61 = vector.broadcast %cst_24 : f32 to vector<32x1xf32>
    %62 = arith.addf %58, %61 : vector<32x1xf32>
    %63 = math.rsqrt %62 : vector<32x1xf32>
    %64 = vector.broadcast %63 : vector<32x1xf32> to vector<32x128xf32>
    %65 = arith.mulf %60, %64 : vector<32x128xf32>
    %c0_25 = arith.constant 0 : index
    %c0_26 = arith.constant 0 : index
    %66 = vector.load %arg7[%c0_25, %c0_26] : memref<1x128xf32, #tpu.memory_space<vmem>>, vector<1x128xf32>
    %67 = vector.broadcast %66 : vector<1x128xf32> to vector<32x128xf32>
    %68 = arith.mulf %65, %67 : vector<32x128xf32>
    %c0_27 = arith.constant 0 : index
    %c0_28 = arith.constant 0 : index
    %69 = vector.load %arg8[%c0_27, %c0_28] : memref<1x128xf32, #tpu.memory_space<vmem>>, vector<1x128xf32>
    %70 = vector.broadcast %69 : vector<1x128xf32> to vector<32x128xf32>
    %71 = arith.addf %68, %70 : vector<32x128xf32>
    %72 = arith.addf %71, %1 : vector<32x128xf32>
    %c0_29 = arith.constant 0 : index
    %c0_30 = arith.constant 0 : index
    %73 = vector.load %arg9[%c0_29, %c0_30] : memref<32x128xf32, #tpu.memory_space<vmem>>, vector<32x128xf32>
    tpu.vector_store %arg9[%c0_29, %c0_30], %72 {strides = array<i32>} : memref<32x128xf32, #tpu.memory_space<vmem>>, vector<32x128xf32>,
    return
  }
  func.func @transform_0(%arg0: i32) -> (i32, i32) {
    %c0_i32 = arith.constant 0 : i32
    %c0_i32_0 = arith.constant 0 : i32
    %c0_i32_1 = arith.constant 0 : i32
    return %c0_i32, %c0_i32_0 : i32, i32
  }
  func.func @transform_1(%arg0: i32) -> (i32, i32) {
    %c0_i32 = arith.constant 0 : i32
    %c0_i32_0 = arith.constant 0 : i32
    %c0_i32_1 = arith.constant 0 : i32
    return %c0_i32, %c0_i32_0 : i32, i32
  }
  func.func @transform_2(%arg0: i32) -> (i32, i32) {
    %c0_i32 = arith.constant 0 : i32
    %c0_i32_0 = arith.constant 0 : i32
    %c0_i32_1 = arith.constant 0 : i32
    return %c0_i32, %c0_i32_0 : i32, i32
  }
  func.func @transform_3(%arg0: i32) -> (i32, i32) {
    %c0_i32 = arith.constant 0 : i32
    %c0_i32_0 = arith.constant 0 : i32
    %c0_i32_1 = arith.constant 0 : i32
    return %c0_i32, %c0_i32_0 : i32, i32
  }
  func.func @transform_4(%arg0: i32) -> (i32, i32) {
    %c0_i32 = arith.constant 0 : i32
    %c0_i32_0 = arith.constant 0 : i32
    %c0_i32_1 = arith.constant 0 : i32
    return %c0_i32, %c0_i32_0 : i32, i32
  }
  func.func @transform_5(%arg0: i32) -> (i32, i32) {
    %c0_i32 = arith.constant 0 : i32
    %c0_i32_0 = arith.constant 0 : i32
    %c0_i32_1 = arith.constant 0 : i32
    return %c0_i32, %c0_i32_0 : i32, i32
  }
  func.func @transform_6(%arg0: i32) -> (i32, i32) {
    %c0_i32 = arith.constant 0 : i32
    %c0_i32_0 = arith.constant 0 : i32
    %c0_i32_1 = arith.constant 0 : i32
    return %c0_i32, %c0_i32_0 : i32, i32
  }
  func.func @transform_7(%arg0: i32) -> (i32, i32) {
    %c0_i32 = arith.constant 0 : i32
    %c0_i32_0 = arith.constant 0 : i32
    %c0_i32_1 = arith.constant 0 : i32
    return %c0_i32, %c0_i32_0 : i32, i32
  }
  func.func @transform_8(%arg0: i32) -> (i32, i32) {
    %c0_i32 = arith.constant 0 : i32
    %c0_i32_0 = arith.constant 0 : i32
    %c0_i32_1 = arith.constant 0 : i32
    return %c0_i32, %c0_i32_0 : i32, i32
  }
}

</mosaic_0001>

<llo_original>
// kernel: tpu_custom_call.1
$region0: #{tpu_custom_call.1}
  #allocation0 [shape = 'u32[]', space=smem, size = 0x4, offset = 0x4, fixed_abs, tag = 'smem constant byte address 0x4 - core index']
  #allocation1 [shape = 'u32[72,128]{1,0:T(1,128)}', space=vmem, size = 0x9000, scoped, tag = 'internal scratch']
  %s0 = inlined_call_operand.hbm [shape: bf16[32,128], index: 0, kind: input, shape index: {}]
  %s1 = inlined_call_operand.hbm [shape: f32[32,128], index: 1, kind: input, shape index: {}]
  %s2 = inlined_call_operand.hbm [shape: bf16[128,1024], index: 2, kind: input, shape index: {}]
  %s3 = inlined_call_operand.hbm [shape: bf16[256,512], index: 3, kind: input, shape index: {}]
  %s4 = inlined_call_operand.vmem [shape: f32[1,256], index: 4, kind: input, shape index: {}]
  %s5 = inlined_call_operand.vmem [shape: f32[1,256], index: 5, kind: input, shape index: {}]
  %s6 = inlined_call_operand.vmem [shape: f32[1,128], index: 6, kind: input, shape index: {}]
  %s7 = inlined_call_operand.vmem [shape: f32[1,128], index: 7, kind: input, shape index: {}]
  %s8 = inlined_call_operand.hbm [shape: f32[32,128], index: 8, kind: output, shape index: {}]
  %s9 = sld [smem:[#allocation0]]
  $region58: #{tpu_custom_call.1} parent=0
    _
  %s11 = ssub.s32 1, %s9
  %s12 = scalar_select 0, %s11, %s9
  $region1: #{tpu_custom_call.1} parent=0
    #allocation2 [shape = 'u8[8192]{0}', space=vmem, size = 0x2000, scoped, tag = 'input window, operand 0, single buffered']
    #allocation3 [shape = 's32[1]{0}', space=sflag, size = 0x4, scoped, tag = 'scoped memory for tpu_custom_call.1']
    #allocation4 [shape = 's32[1]{0}', space=sflag, size = 0x4, scoped, tag = 'scoped memory for tpu_custom_call.1']
    #allocation5 [shape = 'u8[16384]{0}', space=vmem, size = 0x4000, scoped, tag = 'input window, operand 1, single buffered']
    #allocation6 [shape = 's32[1]{0}', space=sflag, size = 0x4, scoped, tag = 'scoped memory for tpu_custom_call.1']
    #allocation7 [shape = 'u8[262144]{0}', space=vmem, size = 0x40000, scoped, tag = 'input window, operand 2, single buffered']
    #allocation8 [shape = 'u8[262144]{0}', space=vmem, size = 0x40000, scoped, tag = 'input window, operand 3, single buffered']
    #allocation9 [shape = 's32[1]{0}', space=sflag, size = 0x4, scoped, tag = 'scoped memory for tpu_custom_call.1']
    #allocation10 [shape = 'u8[16384]{0}', space=vmem, size = 0x4000, scoped, tag = 'output window, operand 0, single buffered']
    %13 = vsyncpa [#allocation3], 0
    %14 = vsyncpa [#allocation6], 0
    %15 = vsyncpa [#allocation9], 0
    %16 = vsyncpa [#allocation4], 0
    // Predicated region
    $region2: #{tpu_custom_call.1} parent=1 // pred_check
      _
    $region3: #{tpu_custom_call.1} parent=1 // pred_check_branch
      %18 = sbr.rel (0) target = $region5
    $region4: #{tpu_custom_call.1} parent=1 // pred_region
      %20 = vsyncadd [#allocation3], 0
      %s21 = sshll.u32 %s0, 4
      %s22 = int_to_ptr.hbm [resolvable:$true] %s21
      %s23 = sshll.u32 [#allocation2], 4
      %s24 = int_to_ptr.vmem [resolvable:$true] %s23
      %29 = dma.hbm_to_vmem [thread:$0]  %s22, 256, %s24, [#allocation3], 64, 64, 4
    $region5: #{tpu_custom_call.1} parent=1 // pred_fallthru
      _
    // Predicated region
    $region6: #{tpu_custom_call.1} parent=1 // pred_check
      _
    $region7: #{tpu_custom_call.1} parent=1 // pred_check_branch
      %31 = sbr.rel (0) target = $region9
    $region8: #{tpu_custom_call.1} parent=1 // pred_region
      %33 = vsyncadd [#allocation6], 0
      %s34 = sshll.u32 %s1, 4
      %s35 = int_to_ptr.hbm [resolvable:$true] %s34
      %s36 = sshll.u32 [#allocation5], 4
      %s37 = int_to_ptr.vmem [resolvable:$true] %s36
      %42 = dma.hbm_to_vmem [thread:$0]  %s35, 512, %s37, [#allocation6], 128, 128, 8
    $region9: #{tpu_custom_call.1} parent=1 // pred_fallthru
      _
    // Predicated region
    $region10: #{tpu_custom_call.1} parent=1 // pred_check
      _
    $region11: #{tpu_custom_call.1} parent=1 // pred_check_branch
      %44 = sbr.rel (0) target = $region13
    $region12: #{tpu_custom_call.1} parent=1 // pred_region
      %46 = vsyncadd [#allocation6], 0
      %s47 = sshll.u32 %s2, 4
      %s48 = int_to_ptr.hbm [resolvable:$true] %s47
      %s49 = sshll.u32 [#allocation7], 4
      %s50 = int_to_ptr.vmem [resolvable:$true] %s49
      %55 = dma.hbm_to_vmem [thread:$0]  %s48, 8192, %s50, [#allocation6], 512, 512, 32
    $region13: #{tpu_custom_call.1} parent=1 // pred_fallthru
      _
    // Predicated region
    $region14: #{tpu_custom_call.1} parent=1 // pred_check
      _
    $region15: #{tpu_custom_call.1} parent=1 // pred_check_branch
      %57 = sbr.rel (0) target = $region17
    $region16: #{tpu_custom_call.1} parent=1 // pred_region
      %59 = vsyncadd [#allocation9], 0
      %s60 = sshll.u32 %s3, 4
      %s61 = int_to_ptr.hbm [resolvable:$true] %s60
      %s62 = sshll.u32 [#allocation8], 4
      %s63 = int_to_ptr.vmem [resolvable:$true] %s62
      %68 = dma.hbm_to_vmem [thread:$0]  %s61, 8192, %s63, [#allocation9], 256, 256, 16
    $region17: #{tpu_custom_call.1} parent=1 // pred_fallthru
      _
    // Predicated region
    $region18: #{tpu_custom_call.1} parent=1 // pred_check
      _
    $region19: #{tpu_custom_call.1} parent=1 // pred_check_branch
      %70 = sbr.rel (0) target = $region21
    $region20: #{tpu_custom_call.1} parent=1 // pred_region
      _
    $region21: #{tpu_custom_call.1} parent=1 // pred_fallthru
      _
    // Predicated region
    $region22: #{tpu_custom_call.1} parent=1 // pred_check
      _
    $region23: #{tpu_custom_call.1} parent=1 // pred_check_branch
      %72 = sbr.rel (0) target = $region25
    $region24: #{tpu_custom_call.1} parent=1 // pred_region
      _
    $region25: #{tpu_custom_call.1} parent=1 // pred_fallthru
      _
    // Predicated region
    $region26: #{tpu_custom_call.1} parent=1 // pred_check
      _
    $region27: #{tpu_custom_call.1} parent=1 // pred_check_branch
      %74 = sbr.rel (0) target = $region29
    $region28: #{tpu_custom_call.1} parent=1 // pred_region
      _
    $region29: #{tpu_custom_call.1} parent=1 // pred_fallthru
      _
    // Predicated region
    $region30: #{tpu_custom_call.1} parent=1 // pred_check
      _
    $region31: #{tpu_custom_call.1} parent=1 // pred_check_branch
      %76 = sbr.rel (0) target = $region33
    $region32: #{tpu_custom_call.1} parent=1 // pred_region
      _
    $region33: #{tpu_custom_call.1} parent=1 // pred_fallthru
      _
    // Predicated region
    $region34: #{tpu_custom_call.1} parent=1 // pred_check
      _
    $region35: #{tpu_custom_call.1} parent=1 // pred_check_branch
      %78 = sbr.rel (0) target = $region37
    $region36: #{tpu_custom_call.1} parent=1 // pred_region
      %80 = dma.done [#allocation3], 256
    $region37: #{tpu_custom_call.1} parent=1 // pred_fallthru
      _
    // Predicated region
    $region38: #{tpu_custom_call.1} parent=1 // pred_check
      _
    $region39: #{tpu_custom_call.1} parent=1 // pred_check_branch
      %82 = sbr.rel (0) target = $region41
    $region40: #{tpu_custom_call.1} parent=1 // pred_region
      %84 = dma.done [#allocation6], 512
    $region41: #{tpu_custom_call.1} parent=1 // pred_fallthru
      _
    // Predicated region
    $region42: #{tpu_custom_call.1} parent=1 // pred_check
      _
    $region43: #{tpu_custom_call.1} parent=1 // pred_check_branch
      %86 = sbr.rel (0) target = $region45
    $region44: #{tpu_custom_call.1} parent=1 // pred_region
      %88 = dma.done [#allocation6], 8192
    $region45: #{tpu_custom_call.1} parent=1 // pred_fallthru
      _
    // Predicated region
    $region46: #{tpu_custom_call.1} parent=1 // pred_check
      _
    $region47: #{tpu_custom_call.1} parent=1 // pred_check_branch
      %90 = sbr.rel (0) target = $region49
    $region48: #{tpu_custom_call.1} parent=1 // pred_region
      %92 = dma.done [#allocation9], 8192
    $region49: #{tpu_custom_call.1} parent=1 // pred_fallthru
      _
    %v93 = vld [vmem:[#allocation2] sm:$0xf]
    %v94 = vld [vmem:[#allocation2 + $0x4] sm:$0xf]
    %v95 = vld [vmem:[#allocation2 + $0x8] sm:$0xf]
    %v96 = vld [vmem:[#allocation2 + $0xc] sm:$0xf]
    %v97 = vld [vmem:[#allocation5] sm:$0xff]
    %v98 = vld [vmem:[#allocation5 + $0x8] sm:$0xff]
    %v99 = vld [vmem:[#allocation5 + $0x10] sm:$0xff]
    %v100 = vld [vmem:[#allocation5 + $0x18] sm:$0xff]
    %v101 = vpack.c.bf16 %v98, %v97
    %v102 = vpack.c.bf16 %v100, %v99
    %v103 = vld [vmem:[#allocation7] sm:$0xff]
    %v104 = vld [vmem:[#allocation7 + $0x8] sm:$0xff]
    %v105 = vld [vmem:[#allocation7 + $0x10] sm:$0xff]
    %v106 = vld [vmem:[#allocation7 + $0x18] sm:$0xff]
    %v107 = vld [vmem:[#allocation7 + $0x20] sm:$0xff]
    %v108 = vld [vmem:[#allocation7 + $0x28] sm:$0xff]
    %v109 = vld [vmem:[#allocation7 + $0x30] sm:$0xff]
    %v110 = vld [vmem:[#allocation7 + $0x38] sm:$0xff]
    %v111 = vld [vmem:[#allocation7 + $0x40] sm:$0xff]
    %v112 = vld [vmem:[#allocation7 + $0x48] sm:$0xff]
    %v113 = vld [vmem:[#allocation7 + $0x50] sm:$0xff]
    %v114 = vld [vmem:[#allocation7 + $0x58] sm:$0xff]
    %v115 = vld [vmem:[#allocation7 + $0x60] sm:$0xff]
    %v116 = vld [vmem:[#allocation7 + $0x68] sm:$0xff]
    %v117 = vld [vmem:[#allocation7 + $0x70] sm:$0xff]
    %v118 = vld [vmem:[#allocation7 + $0x78] sm:$0xff]
    %v119 = vld [vmem:[#allocation7 + $0x80] sm:$0xff]
    %v120 = vld [vmem:[#allocation7 + $0x88] sm:$0xff]
    %v121 = vld [vmem:[#allocation7 + $0x90] sm:$0xff]
    %v122 = vld [vmem:[#allocation7 + $0x98] sm:$0xff]
    %v123 = vld [vmem:[#allocation7 + $0xa0] sm:$0xff]
    %v124 = vld [vmem:[#allocation7 + $0xa8] sm:$0xff]
    %v125 = vld [vmem:[#allocation7 + $0xb0] sm:$0xff]
    %v126 = vld [vmem:[#allocation7 + $0xb8] sm:$0xff]
    %v127 = vld [vmem:[#allocation7 + $0xc0] sm:$0xff]
    %v128 = vld [vmem:[#allocation7 + $0xc8] sm:$0xff]
    %v129 = vld [vmem:[#allocation7 + $0xd0] sm:$0xff]
    %v130 = vld [vmem:[#allocation7 + $0xd8] sm:$0xff]
    %v131 = vld [vmem:[#allocation7 + $0xe0] sm:$0xff]
    %v132 = vld [vmem:[#allocation7 + $0xe8] sm:$0xff]
    %v133 = vld [vmem:[#allocation7 + $0xf0] sm:$0xff]
    %v134 = vld [vmem:[#allocation7 + $0xf8] sm:$0xff]
    %v135 = vld [vmem:[#allocation7 + $0x100] sm:$0xff]
    %v136 = vld [vmem:[#allocation7 + $0x108] sm:$0xff]
    %v137 = vld [vmem:[#allocation7 + $0x110] sm:$0xff]
    %v138 = vld [vmem:[#allocation7 + $0x118] sm:$0xff]
    %v139 = vld [vmem:[#allocation7 + $0x120] sm:$0xff]
    %v140 = vld [vmem:[#allocation7 + $0x128] sm:$0xff]
    %v141 = vld [vmem:[#allocation7 + $0x130] sm:$0xff]
    %v142 = vld [vmem:[#allocation7 + $0x138] sm:$0xff]
    %v143 = vld [vmem:[#allocation7 + $0x140] sm:$0xff]
    %v144 = vld [vmem:[#allocation7 + $0x148] sm:$0xff]
    %v145 = vld [vmem:[#allocation7 + $0x150] sm:$0xff]
    %v146 = vld [vmem:[#allocation7 + $0x158] sm:$0xff]
    %v147 = vld [vmem:[#allocation7 + $0x160] sm:$0xff]
    %v148 = vld [vmem:[#allocation7 + $0x168] sm:$0xff]
    %v149 = vld [vmem:[#allocation7 + $0x170] sm:$0xff]
    %v150 = vld [vmem:[#allocation7 + $0x178] sm:$0xff]
    %v151 = vld [vmem:[#allocation7 + $0x180] sm:$0xff]
    %v152 = vld [vmem:[#allocation7 + $0x188] sm:$0xff]
    %v153 = vld [vmem:[#allocation7 + $0x190] sm:$0xff]
    %v154 = vld [vmem:[#allocation7 + $0x198] sm:$0xff]
    %v155 = vld [vmem:[#allocation7 + $0x1a0] sm:$0xff]
    %v156 = vld [vmem:[#allocation7 + $0x1a8] sm:$0xff]
    %v157 = vld [vmem:[#allocation7 + $0x1b0] sm:$0xff]
    %v158 = vld [vmem:[#allocation7 + $0x1b8] sm:$0xff]
    %v159 = vld [vmem:[#allocation7 + $0x1c0] sm:$0xff]
    %v160 = vld [vmem:[#allocation7 + $0x1c8] sm:$0xff]
    %v161 = vld [vmem:[#allocation7 + $0x1d0] sm:$0xff]
    %v162 = vld [vmem:[#allocation7 + $0x1d8] sm:$0xff]
    %v163 = vld [vmem:[#allocation7 + $0x1e0] sm:$0xff]
    %v164 = vld [vmem:[#allocation7 + $0x1e8] sm:$0xff]
    %v165 = vld [vmem:[#allocation7 + $0x1f0] sm:$0xff]
    %v166 = vld [vmem:[#allocation7 + $0x1f8] sm:$0xff]
    %v231 = vunpack.c.l.b16 %v103
    %v232 = vunpack.c.h.b16 %v103
    %v233 = vunpack.c.l.b16 %v104
    %v234 = vunpack.c.h.b16 %v104
    %v235 = vunpack.c.l.b16 %v105
    %v236 = vunpack.c.h.b16 %v105
    %v237 = vunpack.c.l.b16 %v106
    %v238 = vunpack.c.h.b16 %v106
    %v239 = vunpack.c.l.b16 %v107
    %v240 = vunpack.c.h.b16 %v107
    %v241 = vunpack.c.l.b16 %v108
    %v242 = vunpack.c.h.b16 %v108
    %v243 = vunpack.c.l.b16 %v109
    %v244 = vunpack.c.h.b16 %v109
    %v245 = vunpack.c.l.b16 %v110
    %v246 = vunpack.c.h.b16 %v110
    %v247 = vunpack.c.l.b16 %v111
    %v248 = vunpack.c.h.b16 %v111
    %v249 = vunpack.c.l.b16 %v112
    %v250 = vunpack.c.h.b16 %v112
    %v251 = vunpack.c.l.b16 %v113
    %v252 = vunpack.c.h.b16 %v113
    %v253 = vunpack.c.l.b16 %v114
    %v254 = vunpack.c.h.b16 %v114
    %v255 = vunpack.c.l.b16 %v115
    %v256 = vunpack.c.h.b16 %v115
    %v257 = vunpack.c.l.b16 %v116
    %v258 = vunpack.c.h.b16 %v116
    %v259 = vunpack.c.l.b16 %v117
    %v260 = vunpack.c.h.b16 %v117
    %v261 = vunpack.c.l.b16 %v118
    %v262 = vunpack.c.h.b16 %v118
    %v263 = vunpack.c.l.b16 %v119
    %v264 = vunpack.c.h.b16 %v119
    %v265 = vunpack.c.l.b16 %v120
    %v266 = vunpack.c.h.b16 %v120
    %v267 = vunpack.c.l.b16 %v121
    %v268 = vunpack.c.h.b16 %v121
    %v269 = vunpack.c.l.b16 %v122
    %v270 = vunpack.c.h.b16 %v122
    %v271 = vunpack.c.l.b16 %v123
    %v272 = vunpack.c.h.b16 %v123
    %v273 = vunpack.c.l.b16 %v124
    %v274 = vunpack.c.h.b16 %v124
    %v275 = vunpack.c.l.b16 %v125
    %v276 = vunpack.c.h.b16 %v125
    %v277 = vunpack.c.l.b16 %v126
    %v278 = vunpack.c.h.b16 %v126
    %v279 = vunpack.c.l.b16 %v127
    %v280 = vunpack.c.h.b16 %v127
    %v281 = vunpack.c.l.b16 %v128
    %v282 = vunpack.c.h.b16 %v128
    %v283 = vunpack.c.l.b16 %v129
    %v284 = vunpack.c.h.b16 %v129
    %v285 = vunpack.c.l.b16 %v130
    %v286 = vunpack.c.h.b16 %v130
    %v287 = vunpack.c.l.b16 %v131
    %v288 = vunpack.c.h.b16 %v131
    %v289 = vunpack.c.l.b16 %v132
    %v290 = vunpack.c.h.b16 %v132
    %v291 = vunpack.c.l.b16 %v133
    %v292 = vunpack.c.h.b16 %v133
    %v293 = vunpack.c.l.b16 %v134
    %v294 = vunpack.c.h.b16 %v134
    %v295 = vunpack.c.l.b16 %v135
    %v296 = vunpack.c.h.b16 %v135
    %v297 = vunpack.c.l.b16 %v136
    %v298 = vunpack.c.h.b16 %v136
    %v299 = vunpack.c.l.b16 %v137
    %v300 = vunpack.c.h.b16 %v137
    %v301 = vunpack.c.l.b16 %v138
    %v302 = vunpack.c.h.b16 %v138
    %v303 = vunpack.c.l.b16 %v139
    %v304 = vunpack.c.h.b16 %v139
    %v305 = vunpack.c.l.b16 %v140
    %v306 = vunpack.c.h.b16 %v140
    %v307 = vunpack.c.l.b16 %v141
    %v308 = vunpack.c.h.b16 %v141
    %v309 = vunpack.c.l.b16 %v142
    %v310 = vunpack.c.h.b16 %v142
    %v311 = vunpack.c.l.b16 %v143
    %v312 = vunpack.c.h.b16 %v143
    %v313 = vunpack.c.l.b16 %v144
    %v314 = vunpack.c.h.b16 %v144
    %v315 = vunpack.c.l.b16 %v145
    %v316 = vunpack.c.h.b16 %v145
    %v317 = vunpack.c.l.b16 %v146
    %v318 = vunpack.c.h.b16 %v146
    %v319 = vunpack.c.l.b16 %v147
    %v320 = vunpack.c.h.b16 %v147
    %v321 = vunpack.c.l.b16 %v148
    %v322 = vunpack.c.h.b16 %v148
    %v323 = vunpack.c.l.b16 %v149
    %v324 = vunpack.c.h.b16 %v149
    %v325 = vunpack.c.l.b16 %v150
    %v326 = vunpack.c.h.b16 %v150
    %v327 = vunpack.c.l.b16 %v151
    %v328 = vunpack.c.h.b16 %v151
    %v329 = vunpack.c.l.b16 %v152
    %v330 = vunpack.c.h.b16 %v152
    %v331 = vunpack.c.l.b16 %v153
    %v332 = vunpack.c.h.b16 %v153
    %v333 = vunpack.c.l.b16 %v154
    %v334 = vunpack.c.h.b16 %v154
    %v335 = vunpack.c.l.b16 %v155
    %v336 = vunpack.c.h.b16 %v155
    %v337 = vunpack.c.l.b16 %v156
    %v338 = vunpack.c.h.b16 %v156
    %v339 = vunpack.c.l.b16 %v157
    %v340 = vunpack.c.h.b16 %v157
    %v341 = vunpack.c.l.b16 %v158
    %v342 = vunpack.c.h.b16 %v158
    %v343 = vunpack.c.l.b16 %v159
    %v344 = vunpack.c.h.b16 %v159
    %v345 = vunpack.c.l.b16 %v160
    %v346 = vunpack.c.h.b16 %v160
    %v347 = vunpack.c.l.b16 %v161
    %v348 = vunpack.c.h.b16 %v161
    %v349 = vunpack.c.l.b16 %v162
    %v350 = vunpack.c.h.b16 %v162
    %v351 = vunpack.c.l.b16 %v163
    %v352 = vunpack.c.h.b16 %v163
    %v353 = vunpack.c.l.b16 %v164
    %v354 = vunpack.c.h.b16 %v164
    %v355 = vunpack.c.l.b16 %v165
    %v356 = vunpack.c.h.b16 %v165
    %v357 = vunpack.c.l.b16 %v166
    %v358 = vunpack.c.h.b16 %v166
    %v359 = vpack.c.b16 %v239, %v231
    %v360 = vpack.c.b16 %v240, %v232
    %v361 = vpack.c.b16 %v241, %v233
    %v362 = vpack.c.b16 %v242, %v234
    %v363 = vpack.c.b16 %v243, %v235
    %v364 = vpack.c.b16 %v244, %v236
    %v365 = vpack.c.b16 %v245, %v237
    %v366 = vpack.c.b16 %v246, %v238
    %v367 = vpack.c.b16 %v255, %v247
    %v368 = vpack.c.b16 %v256, %v248
    %v369 = vpack.c.b16 %v257, %v249
    %v370 = vpack.c.b16 %v258, %v250
    %v371 = vpack.c.b16 %v259, %v251
    %v372 = vpack.c.b16 %v260, %v252
    %v373 = vpack.c.b16 %v261, %v253
    %v374 = vpack.c.b16 %v262, %v254
    %v375 = vpack.c.b16 %v271, %v263
    %v376 = vpack.c.b16 %v272, %v264
    %v377 = vpack.c.b16 %v273, %v265
    %v378 = vpack.c.b16 %v274, %v266
    %v379 = vpack.c.b16 %v275, %v267
    %v380 = vpack.c.b16 %v276, %v268
    %v381 = vpack.c.b16 %v277, %v269
    %v382 = vpack.c.b16 %v278, %v270
    %v383 = vpack.c.b16 %v287, %v279
    %v384 = vpack.c.b16 %v288, %v280
    %v385 = vpack.c.b16 %v289, %v281
    %v386 = vpack.c.b16 %v290, %v282
    %v387 = vpack.c.b16 %v291, %v283
    %v388 = vpack.c.b16 %v292, %v284
    %v389 = vpack.c.b16 %v293, %v285
    %v390 = vpack.c.b16 %v294, %v286
    %v391 = vpack.c.b16 %v303, %v295
    %v392 = vpack.c.b16 %v304, %v296
    %v393 = vpack.c.b16 %v305, %v297
    %v394 = vpack.c.b16 %v306, %v298
    %v395 = vpack.c.b16 %v307, %v299
    %v396 = vpack.c.b16 %v308, %v300
    %v397 = vpack.c.b16 %v309, %v301
    %v398 = vpack.c.b16 %v310, %v302
    %v399 = vpack.c.b16 %v319, %v311
    %v400 = vpack.c.b16 %v320, %v312
    %v401 = vpack.c.b16 %v321, %v313
    %v402 = vpack.c.b16 %v322, %v314
    %v403 = vpack.c.b16 %v323, %v315
    %v404 = vpack.c.b16 %v324, %v316
    %v405 = vpack.c.b16 %v325, %v317
    %v406 = vpack.c.b16 %v326, %v318
    %v407 = vpack.c.b16 %v335, %v327
    %v408 = vpack.c.b16 %v336, %v328
    %v409 = vpack.c.b16 %v337, %v329
    %v410 = vpack.c.b16 %v338, %v330
    %v411 = vpack.c.b16 %v339, %v331
    %v412 = vpack.c.b16 %v340, %v332
    %v413 = vpack.c.b16 %v341, %v333
    %v414 = vpack.c.b16 %v342, %v334
    %v415 = vpack.c.b16 %v351, %v343
    %v416 = vpack.c.b16 %v352, %v344
    %v417 = vpack.c.b16 %v353, %v345
    %v418 = vpack.c.b16 %v354, %v346
    %v419 = vpack.c.b16 %v355, %v347
    %v420 = vpack.c.b16 %v356, %v348
    %v421 = vpack.c.b16 %v357, %v349
    %v422 = vpack.c.b16 %v358, %v350
    %487 = vmatpush.bf16.msra.mxu0 %v415
    %488 = vmatpush.bf16.msra.mxu0 %v407
    %489 = vmatpush.bf16.msra.mxu0 %v399
    %490 = vmatpush.bf16.msra.mxu0 %v391
    %491 = vmatpush.bf16.msra.mxu0 %v383
    %492 = vmatpush.bf16.msra.mxu0 %v375
    %493 = vmatpush.bf16.msra.mxu0 %v367
    %494 = vmatpush.bf16.msra.mxu0 %v359
    %495 = vmatmul.bf16.gmra.mxu0 %v101
    %v496 = vpop.f32.mrf.mxu0
    %v497 = vadd.f32 0.0, %v496
    %v498 = vpop.f32.mrf.mxu0
    %v499 = vadd.f32 0.0, %v498
    %500 = vmatmul.bf16.gmra.mxu0 %v102
    %v501 = vpop.f32.mrf.mxu0
    %v502 = vadd.f32 0.0, %v501
    %v503 = vpop.f32.mrf.mxu0
    %v504 = vadd.f32 0.0, %v503
    %505 = vdwg.mxu0
    %506 = vmatpush.bf16.msra.mxu0 %v416
    %507 = vmatpush.bf16.msra.mxu0 %v408
    %508 = vmatpush.bf16.msra.mxu0 %v400
    %509 = vmatpush.bf16.msra.mxu0 %v392
    %510 = vmatpush.bf16.msra.mxu0 %v384
    %511 = vmatpush.bf16.msra.mxu0 %v376
    %512 = vmatpush.bf16.msra.mxu0 %v368
    %513 = vmatpush.bf16.msra.mxu0 %v360
    %514 = vmatmul.bf16.gmra.mxu0 %v101
    %v515 = vpop.f32.mrf.mxu0
    %v516 = vadd.f32 0.0, %v515
    %v517 = vpop.f32.mrf.mxu0
    %v518 = vadd.f32 0.0, %v517
    %519 = vmatmul.bf16.gmra.mxu0 %v102
    %v520 = vpop.f32.mrf.mxu0
    %v521 = vadd.f32 0.0, %v520
    %v522 = vpop.f32.mrf.mxu0
    %v523 = vadd.f32 0.0, %v522
    %524 = vdwg.mxu0
    %525 = vmatpush.bf16.msra.mxu0 %v417
    %526 = vmatpush.bf16.msra.mxu0 %v409
    %527 = vmatpush.bf16.msra.mxu0 %v401
    %528 = vmatpush.bf16.msra.mxu0 %v393
    %529 = vmatpush.bf16.msra.mxu0 %v385
    %530 = vmatpush.bf16.msra.mxu0 %v377
    %531 = vmatpush.bf16.msra.mxu0 %v369
    %532 = vmatpush.bf16.msra.mxu0 %v361
    %533 = vmatmul.bf16.gmra.mxu0 %v101
    %v534 = vpop.f32.mrf.mxu0
    %v535 = vadd.f32 0.0, %v534
    %v536 = vpop.f32.mrf.mxu0
    %v537 = vadd.f32 0.0, %v536
    %538 = vmatmul.bf16.gmra.mxu0 %v102
    %v539 = vpop.f32.mrf.mxu0
    %v540 = vadd.f32 0.0, %v539
    %v541 = vpop.f32.mrf.mxu0
    %v542 = vadd.f32 0.0, %v541
    %543 = vdwg.mxu0
    %544 = vmatpush.bf16.msra.mxu0 %v418
    %545 = vmatpush.bf16.msra.mxu0 %v410
    %546 = vmatpush.bf16.msra.mxu0 %v402
    %547 = vmatpush.bf16.msra.mxu0 %v394
    %548 = vmatpush.bf16.msra.mxu0 %v386
    %549 = vmatpush.bf16.msra.mxu0 %v378
    %550 = vmatpush.bf16.msra.mxu0 %v370
    %551 = vmatpush.bf16.msra.mxu0 %v362
    %552 = vmatmul.bf16.gmra.mxu0 %v101
    %v553 = vpop.f32.mrf.mxu0
    %v554 = vadd.f32 0.0, %v553
    %v555 = vpop.f32.mrf.mxu0
    %v556 = vadd.f32 0.0, %v555
    %557 = vmatmul.bf16.gmra.mxu0 %v102
    %v558 = vpop.f32.mrf.mxu0
    %v559 = vadd.f32 0.0, %v558
    %v560 = vpop.f32.mrf.mxu0
    %v561 = vadd.f32 0.0, %v560
    %562 = vdwg.mxu0
    %563 = vmatpush.bf16.msra.mxu0 %v419
    %564 = vmatpush.bf16.msra.mxu0 %v411
    %565 = vmatpush.bf16.msra.mxu0 %v403
    %566 = vmatpush.bf16.msra.mxu0 %v395
    %567 = vmatpush.bf16.msra.mxu0 %v387
    %568 = vmatpush.bf16.msra.mxu0 %v379
    %569 = vmatpush.bf16.msra.mxu0 %v371
    %570 = vmatpush.bf16.msra.mxu0 %v363
    %571 = vmatmul.bf16.gmra.mxu0 %v101
    %v572 = vpop.f32.mrf.mxu0
    %v573 = vadd.f32 0.0, %v572
    %v574 = vpop.f32.mrf.mxu0
    %v575 = vadd.f32 0.0, %v574
    %576 = vmatmul.bf16.gmra.mxu0 %v102
    %v577 = vpop.f32.mrf.mxu0
    %v578 = vadd.f32 0.0, %v577
    %v579 = vpop.f32.mrf.mxu0
    %v580 = vadd.f32 0.0, %v579
    %581 = vdwg.mxu0
    %582 = vmatpush.bf16.msra.mxu0 %v420
    %583 = vmatpush.bf16.msra.mxu0 %v412
    %584 = vmatpush.bf16.msra.mxu0 %v404
    %585 = vmatpush.bf16.msra.mxu0 %v396
    %586 = vmatpush.bf16.msra.mxu0 %v388
    %587 = vmatpush.bf16.msra.mxu0 %v380
    %588 = vmatpush.bf16.msra.mxu0 %v372
    %589 = vmatpush.bf16.msra.mxu0 %v364
    %590 = vmatmul.bf16.gmra.mxu0 %v101
    %v591 = vpop.f32.mrf.mxu0
    %v592 = vadd.f32 0.0, %v591
    %v593 = vpop.f32.mrf.mxu0
    %v594 = vadd.f32 0.0, %v593
    %595 = vmatmul.bf16.gmra.mxu0 %v102
    %v596 = vpop.f32.mrf.mxu0
    %v597 = vadd.f32 0.0, %v596
    %v598 = vpop.f32.mrf.mxu0
    %v599 = vadd.f32 0.0, %v598
    %600 = vdwg.mxu0
    %601 = vmatpush.bf16.msra.mxu0 %v421
    %602 = vmatpush.bf16.msra.mxu0 %v413
    %603 = vmatpush.bf16.msra.mxu0 %v405
    %604 = vmatpush.bf16.msra.mxu0 %v397
    %605 = vmatpush.bf16.msra.mxu0 %v389
    %606 = vmatpush.bf16.msra.mxu0 %v381
    %607 = vmatpush.bf16.msra.mxu0 %v373
    %608 = vmatpush.bf16.msra.mxu0 %v365
    %609 = vmatmul.bf16.gmra.mxu0 %v101
    %v610 = vpop.f32.mrf.mxu0
    %v611 = vadd.f32 0.0, %v610
    %v612 = vpop.f32.mrf.mxu0
    %v613 = vadd.f32 0.0, %v612
    %614 = vmatmul.bf16.gmra.mxu0 %v102
    %v615 = vpop.f32.mrf.mxu0
    %v616 = vadd.f32 0.0, %v615
    %v617 = vpop.f32.mrf.mxu0
    %v618 = vadd.f32 0.0, %v617
    %619 = vdwg.mxu0
    %620 = vmatpush.bf16.msra.mxu0 %v422
    %621 = vmatpush.bf16.msra.mxu0 %v414
    %622 = vmatpush.bf16.msra.mxu0 %v406
    %623 = vmatpush.bf16.msra.mxu0 %v398
    %624 = vmatpush.bf16.msra.mxu0 %v390
    %625 = vmatpush.bf16.msra.mxu0 %v382
    %626 = vmatpush.bf16.msra.mxu0 %v374
    %627 = vmatpush.bf16.msra.mxu0 %v366
    %628 = vmatmul.bf16.gmra.mxu0 %v101
    %v629 = vpop.f32.mrf.mxu0
    %v630 = vadd.f32 0.0, %v629
    %v631 = vpop.f32.mrf.mxu0
    %v632 = vadd.f32 0.0, %v631
    %633 = vmatmul.bf16.gmra.mxu0 %v102
    %v634 = vpop.f32.mrf.mxu0
    %v635 = vadd.f32 0.0, %v634
    %v636 = vpop.f32.mrf.mxu0
    %v637 = vadd.f32 0.0, %v636
    %638 = vdwg.mxu0
    %v639 = vpack.c.bf16 %v499, %v497
    %v640 = vpack.c.bf16 %v518, %v516
    %v641 = vpack.c.bf16 %v504, %v502
    %v642 = vpack.c.bf16 %v523, %v521
    %v643 = vpack.c.bf16 %v537, %v535
    %v644 = vpack.c.bf16 %v556, %v554
    %v645 = vpack.c.bf16 %v542, %v540
    %v646 = vpack.c.bf16 %v561, %v559
    %v647 = vpack.c.bf16 %v575, %v573
    %v648 = vpack.c.bf16 %v594, %v592
    %v649 = vpack.c.bf16 %v580, %v578
    %v650 = vpack.c.bf16 %v599, %v597
    %v651 = vpack.c.bf16 %v613, %v611
    %v652 = vpack.c.bf16 %v632, %v630
    %v653 = vpack.c.bf16 %v618, %v616
    %v654 = vpack.c.bf16 %v637, %v635
    %v659 = vunpack.c.l.b16 %v93
    %v660 = vunpack.c.l.b16 %v94
    %v661 = vunpack.c.l.b16 %v95
    %v662 = vunpack.c.l.b16 %v96
    %v663 = vpack.c.b16 %v660, %v659
    %v664 = vpack.c.b16 %v662, %v661
    %667 = vmatpush.bf16.msra.mxu0 %v653
    %668 = vmatpush.bf16.msra.mxu0 %v651
    %669 = vmatpush.bf16.msra.mxu0 %v649
    %670 = vmatpush.bf16.msra.mxu0 %v647
    %671 = vmatpush.bf16.msra.mxu0 %v645
    %672 = vmatpush.bf16.msra.mxu0 %v643
    %673 = vmatpush.bf16.msra.mxu0 %v641
    %674 = vmatpush.bf16.msra.mxu0 %v639
    %675 = vmatmul.bf16.gmra.mxu0 %v663
    %v676 = vpop.f32.mrf.mxu0
    %v677 = vadd.f32 0.0, %v676
    %v678 = vpop.f32.mrf.mxu0
    %v679 = vadd.f32 0.0, %v678
    %680 = vmatmul.bf16.gmra.mxu0 %v664
    %v681 = vpop.f32.mrf.mxu0
    %v682 = vadd.f32 0.0, %v681
    %v683 = vpop.f32.mrf.mxu0
    %v684 = vadd.f32 0.0, %v683
    %685 = vdwg.mxu0
    %686 = vmatpush.bf16.msra.mxu0 %v654
    %687 = vmatpush.bf16.msra.mxu0 %v652
    %688 = vmatpush.bf16.msra.mxu0 %v650
    %689 = vmatpush.bf16.msra.mxu0 %v648
    %690 = vmatpush.bf16.msra.mxu0 %v646
    %691 = vmatpush.bf16.msra.mxu0 %v644
    %692 = vmatpush.bf16.msra.mxu0 %v642
    %693 = vmatpush.bf16.msra.mxu0 %v640
    %694 = vmatmul.bf16.gmra.mxu0 %v663
    %v695 = vpop.f32.mrf.mxu0
    %v696 = vadd.f32 0.0, %v695
    %v697 = vpop.f32.mrf.mxu0
    %v698 = vadd.f32 0.0, %v697
    %699 = vmatmul.bf16.gmra.mxu0 %v664
    %v700 = vpop.f32.mrf.mxu0
    %v701 = vadd.f32 0.0, %v700
    %v702 = vpop.f32.mrf.mxu0
    %v703 = vadd.f32 0.0, %v702
    %704 = vdwg.mxu0
    %v705 = vadd.f32 %v677, %v696
    %706 = vadd.xlane.f32.xlu0 %v705
    %v707 = vpop.xlane.xlu0 %706
    %v708 = vadd.f32 %v679, %v698
    %709 = vadd.xlane.f32.xlu0 %v708
    %v710 = vpop.xlane.xlu0 %709
    %v711 = vadd.f32 %v682, %v701
    %712 = vadd.xlane.f32.xlu0 %v711
    %v713 = vpop.xlane.xlu0 %712
    %v714 = vadd.f32 %v684, %v703
    %715 = vadd.xlane.f32.xlu0 %v714
    %v716 = vpop.xlane.xlu0 %715
    %v717 = vrcp.pop 256.0
    %v718 = vmul.f32 256.0, %v717
    %v719 = vsub.f32 1.0, %v718
    %v720 = vmul.f32 %v717, %v719
    %v721 = vadd.f32 %v717, %v720
    %vm722 = vweird.f32 %v717
    %v723 = vsel %vm722, %v717, %v721
    %v724 = vmul.f32 %v707, %v723
    %v725 = vmul.f32 %v710, %v723
    %v726 = vmul.f32 %v713, %v723
    %v727 = vmul.f32 %v716, %v723
    %v728 = vsub.f32 %v677, %v724
    %v729 = vsub.f32 %v696, %v724
    %v730 = vsub.f32 %v679, %v725
    %v731 = vsub.f32 %v698, %v725
    %v732 = vsub.f32 %v682, %v726
    %v733 = vsub.f32 %v701, %v726
    %v734 = vsub.f32 %v684, %v727
    %v735 = vsub.f32 %v703, %v727
    %v736 = vmul.f32 %v728, %v728
    %v737 = vmul.f32 %v729, %v729
    %v738 = vmul.f32 %v730, %v730
    %v739 = vmul.f32 %v731, %v731
    %v740 = vmul.f32 %v732, %v732
    %v741 = vmul.f32 %v733, %v733
    %v742 = vmul.f32 %v734, %v734
    %v743 = vmul.f32 %v735, %v735
    %v744 = vadd.f32 %v736, %v737
    %745 = vadd.xlane.f32.xlu0 %v744
    %v746 = vpop.xlane.xlu0 %745
    %v747 = vadd.f32 %v738, %v739
    %748 = vadd.xlane.f32.xlu0 %v747
    %v749 = vpop.xlane.xlu0 %748
    %v750 = vadd.f32 %v740, %v741
    %751 = vadd.xlane.f32.xlu0 %v750
    %v752 = vpop.xlane.xlu0 %751
    %v753 = vadd.f32 %v742, %v743
    %754 = vadd.xlane.f32.xlu0 %v753
    %v755 = vpop.xlane.xlu0 %754
    %v756 = vmul.f32 %v746, %v723
    %v757 = vmul.f32 %v749, %v723
    %v758 = vmul.f32 %v752, %v723
    %v759 = vmul.f32 %v755, %v723
    %v760 = vadd.f32 %v756, 1e-05
    %v761 = vadd.f32 %v757, 1e-05
    %v762 = vadd.f32 %v758, 1e-05
    %v763 = vadd.f32 %v759, 1e-05
    %v764 = vrsqrt.pop %v760
    %v765 = vmul.f32 %v764, %v760
    %v766 = vmul.f32 %v765, %v764
    %v767 = vmul.f32 0.5, %v766
    %v768 = vsub.f32 1.5, %v767
    %v769 = vmul.f32 %v764, %v768
    %vm770 = vweird.f32 %v760
    %vm771 = vweird.f32 %v764
    %vm772 = vmor %vm770, %vm771
    %v773 = vsel %vm772, %v764, %v769
    %v774 = vrsqrt.pop %v761
    %v775 = vmul.f32 %v774, %v761
    %v776 = vmul.f32 %v775, %v774
    %v777 = vmul.f32 0.5, %v776
    %v778 = vsub.f32 1.5, %v777
    %v779 = vmul.f32 %v774, %v778
    %vm780 = vweird.f32 %v761
    %vm781 = vweird.f32 %v774
    %vm782 = vmor %vm780, %vm781
    %v783 = vsel %vm782, %v774, %v779
    %v784 = vrsqrt.pop %v762
    %v785 = vmul.f32 %v784, %v762
    %v786 = vmul.f32 %v785, %v784
    %v787 = vmul.f32 0.5, %v786
    %v788 = vsub.f32 1.5, %v787
    %v789 = vmul.f32 %v784, %v788
    %vm790 = vweird.f32 %v762
    %vm791 = vweird.f32 %v784
    %vm792 = vmor %vm790, %vm791
    %v793 = vsel %vm792, %v784, %v789
    %v794 = vrsqrt.pop %v763
    %v795 = vmul.f32 %v794, %v763
    %v796 = vmul.f32 %v795, %v794
    %v797 = vmul.f32 0.5, %v796
    %v798 = vsub.f32 1.5, %v797
    %v799 = vmul.f32 %v794, %v798
    %vm800 = vweird.f32 %v763
    %vm801 = vweird.f32 %v794
    %vm802 = vmor %vm800, %vm801
    %v803 = vsel %vm802, %v794, %v799
    %v804 = vmul.f32 %v728, %v773
    %v805 = vmul.f32 %v729, %v773
    %v806 = vmul.f32 %v730, %v783
    %v807 = vmul.f32 %v731, %v783
    %v808 = vmul.f32 %v732, %v793
    %v809 = vmul.f32 %v733, %v793
    %v810 = vmul.f32 %v734, %v803
    %v811 = vmul.f32 %v735, %v803
    %v812 = vld [vmem:[%s4] sm:$0x3]
    %v814 = vperm.slane %v812, 0
    %v815 = vperm.slane %v812, 1
    %v818 = vmul.f32 %v804, %v814
    %v819 = vmul.f32 %v805, %v815
    %v820 = vmul.f32 %v806, %v814
    %v821 = vmul.f32 %v807, %v815
    %v822 = vmul.f32 %v808, %v814
    %v823 = vmul.f32 %v809, %v815
    %v824 = vmul.f32 %v810, %v814
    %v825 = vmul.f32 %v811, %v815
    %v826 = vld [vmem:[%s5] sm:$0x3]
    %v828 = vperm.slane %v826, 0
    %v829 = vperm.slane %v826, 1
    %v832 = vadd.f32 %v818, %v828
    %v833 = vadd.f32 %v819, %v829
    %v834 = vadd.f32 %v820, %v828
    %v835 = vadd.f32 %v821, %v829
    %v836 = vadd.f32 %v822, %v828
    %v837 = vadd.f32 %v823, %v829
    %v838 = vadd.f32 %v824, %v828
    %v839 = vadd.f32 %v825, %v829
    %v840 = vmax.f32 %v832, 0.0
    %v841 = vmax.f32 %v833, 0.0
    %v842 = vmax.f32 %v834, 0.0
    %v843 = vmax.f32 %v835, 0.0
    %v844 = vmax.f32 %v836, 0.0
    %v845 = vmax.f32 %v837, 0.0
    %v846 = vmax.f32 %v838, 0.0
    %v847 = vmax.f32 %v839, 0.0
    %v848 = vpack.c.bf16 %v842, %v840
    %v849 = vpack.c.bf16 %v843, %v841
    %v850 = vpack.c.bf16 %v846, %v844
    %v851 = vpack.c.bf16 %v847, %v845
    %v852 = vld [vmem:[#allocation8] sm:$0xff]
    %v853 = vld [vmem:[#allocation8 + $0x8] sm:$0xff]
    %v854 = vld [vmem:[#allocation8 + $0x10] sm:$0xff]
    %v855 = vld [vmem:[#allocation8 + $0x18] sm:$0xff]
    %v856 = vld [vmem:[#allocation8 + $0x20] sm:$0xff]
    %v857 = vld [vmem:[#allocation8 + $0x28] sm:$0xff]
    %v858 = vld [vmem:[#allocation8 + $0x30] sm:$0xff]
    %v859 = vld [vmem:[#allocation8 + $0x38] sm:$0xff]
    %v860 = vld [vmem:[#allocation8 + $0x40] sm:$0xff]
    %v861 = vld [vmem:[#allocation8 + $0x48] sm:$0xff]
    %v862 = vld [vmem:[#allocation8 + $0x50] sm:$0xff]
    %v863 = vld [vmem:[#allocation8 + $0x58] sm:$0xff]
    %v864 = vld [vmem:[#allocation8 + $0x60] sm:$0xff]
    %v865 = vld [vmem:[#allocation8 + $0x68] sm:$0xff]
    %v866 = vld [vmem:[#allocation8 + $0x70] sm:$0xff]
    %v867 = vld [vmem:[#allocation8 + $0x78] sm:$0xff]
    %v868 = vld [vmem:[#allocation8 + $0x80] sm:$0xff]
    %v869 = vld [vmem:[#allocation8 + $0x88] sm:$0xff]
    %v870 = vld [vmem:[#allocation8 + $0x90] sm:$0xff]
    %v871 = vld [vmem:[#allocation8 + $0x98] sm:$0xff]
    %v872 = vld [vmem:[#allocation8 + $0xa0] sm:$0xff]
    %v873 = vld [vmem:[#allocation8 + $0xa8] sm:$0xff]
    %v874 = vld [vmem:[#allocation8 + $0xb0] sm:$0xff]
    %v875 = vld [vmem:[#allocation8 + $0xb8] sm:$0xff]
    %v876 = vld [vmem:[#allocation8 + $0xc0] sm:$0xff]
    %v877 = vld [vmem:[#allocation8 + $0xc8] sm:$0xff]
    %v878 = vld [vmem:[#allocation8 + $0xd0] sm:$0xff]
    %v879 = vld [vmem:[#allocation8 + $0xd8] sm:$0xff]
    %v880 = vld [vmem:[#allocation8 + $0xe0] sm:$0xff]
    %v881 = vld [vmem:[#allocation8 + $0xe8] sm:$0xff]
    %v882 = vld [vmem:[#allocation8 + $0xf0] sm:$0xff]
    %v883 = vld [vmem:[#allocation8 + $0xf8] sm:$0xff]
    %v884 = vld [vmem:[#allocation8 + $0x100] sm:$0xff]
    %v885 = vld [vmem:[#allocation8 + $0x108] sm:$0xff]
    %v886 = vld [vmem:[#allocation8 + $0x110] sm:$0xff]
    %v887 = vld [vmem:[#allocation8 + $0x118] sm:$0xff]
    %v888 = vld [vmem:[#allocation8 + $0x120] sm:$0xff]
    %v889 = vld [vmem:[#allocation8 + $0x128] sm:$0xff]
    %v890 = vld [vmem:[#allocation8 + $0x130] sm:$0xff]
    %v891 = vld [vmem:[#allocation8 + $0x138] sm:$0xff]
    %v892 = vld [vmem:[#allocation8 + $0x140] sm:$0xff]
    %v893 = vld [vmem:[#allocation8 + $0x148] sm:$0xff]
    %v894 = vld [vmem:[#allocation8 + $0x150] sm:$0xff]
    %v895 = vld [vmem:[#allocation8 + $0x158] sm:$0xff]
    %v896 = vld [vmem:[#allocation8 + $0x160] sm:$0xff]
    %v897 = vld [vmem:[#allocation8 + $0x168] sm:$0xff]
    %v898 = vld [vmem:[#allocation8 + $0x170] sm:$0xff]
    %v899 = vld [vmem:[#allocation8 + $0x178] sm:$0xff]
    %v900 = vld [vmem:[#allocation8 + $0x180] sm:$0xff]
    %v901 = vld [vmem:[#allocation8 + $0x188] sm:$0xff]
    %v902 = vld [vmem:[#allocation8 + $0x190] sm:$0xff]
    %v903 = vld [vmem:[#allocation8 + $0x198] sm:$0xff]
    %v904 = vld [vmem:[#allocation8 + $0x1a0] sm:$0xff]
    %v905 = vld [vmem:[#allocation8 + $0x1a8] sm:$0xff]
    %v906 = vld [vmem:[#allocation8 + $0x1b0] sm:$0xff]
    %v907 = vld [vmem:[#allocation8 + $0x1b8] sm:$0xff]
    %v908 = vld [vmem:[#allocation8 + $0x1c0] sm:$0xff]
    %v909 = vld [vmem:[#allocation8 + $0x1c8] sm:$0xff]
    %v910 = vld [vmem:[#allocation8 + $0x1d0] sm:$0xff]
    %v911 = vld [vmem:[#allocation8 + $0x1d8] sm:$0xff]
    %v912 = vld [vmem:[#allocation8 + $0x1e0] sm:$0xff]
    %v913 = vld [vmem:[#allocation8 + $0x1e8] sm:$0xff]
    %v914 = vld [vmem:[#allocation8 + $0x1f0] sm:$0xff]
    %v915 = vld [vmem:[#allocation8 + $0x1f8] sm:$0xff]
    %v980 = vunpack.c.l.b16 %v852
    %v981 = vunpack.c.h.b16 %v852
    %v982 = vunpack.c.l.b16 %v853
    %v983 = vunpack.c.h.b16 %v853
    %v984 = vunpack.c.l.b16 %v854
    %v985 = vunpack.c.h.b16 %v854
    %v986 = vunpack.c.l.b16 %v855
    %v987 = vunpack.c.h.b16 %v855
    %v988 = vunpack.c.l.b16 %v856
    %v989 = vunpack.c.h.b16 %v856
    %v990 = vunpack.c.l.b16 %v857
    %v991 = vunpack.c.h.b16 %v857
    %v992 = vunpack.c.l.b16 %v858
    %v993 = vunpack.c.h.b16 %v858
    %v994 = vunpack.c.l.b16 %v859
    %v995 = vunpack.c.h.b16 %v859
    %v996 = vunpack.c.l.b16 %v860
    %v997 = vunpack.c.h.b16 %v860
    %v998 = vunpack.c.l.b16 %v861
    %v999 = vunpack.c.h.b16 %v861
    %v1000 = vunpack.c.l.b16 %v862
    %v1001 = vunpack.c.h.b16 %v862
    %v1002 = vunpack.c.l.b16 %v863
    %v1003 = vunpack.c.h.b16 %v863
    %v1004 = vunpack.c.l.b16 %v864
    %v1005 = vunpack.c.h.b16 %v864
    %v1006 = vunpack.c.l.b16 %v865
    %v1007 = vunpack.c.h.b16 %v865
    %v1008 = vunpack.c.l.b16 %v866
    %v1009 = vunpack.c.h.b16 %v866
    %v1010 = vunpack.c.l.b16 %v867
    %v1011 = vunpack.c.h.b16 %v867
    %v1012 = vunpack.c.l.b16 %v868
    %v1013 = vunpack.c.h.b16 %v868
    %v1014 = vunpack.c.l.b16 %v869
    %v1015 = vunpack.c.h.b16 %v869
    %v1016 = vunpack.c.l.b16 %v870
    %v1017 = vunpack.c.h.b16 %v870
    %v1018 = vunpack.c.l.b16 %v871
    %v1019 = vunpack.c.h.b16 %v871
    %v1020 = vunpack.c.l.b16 %v872
    %v1021 = vunpack.c.h.b16 %v872
    %v1022 = vunpack.c.l.b16 %v873
    %v1023 = vunpack.c.h.b16 %v873
    %v1024 = vunpack.c.l.b16 %v874
    %v1025 = vunpack.c.h.b16 %v874
    %v1026 = vunpack.c.l.b16 %v875
    %v1027 = vunpack.c.h.b16 %v875
    %v1028 = vunpack.c.l.b16 %v876
    %v1029 = vunpack.c.h.b16 %v876
    %v1030 = vunpack.c.l.b16 %v877
    %v1031 = vunpack.c.h.b16 %v877
    %v1032 = vunpack.c.l.b16 %v878
    %v1033 = vunpack.c.h.b16 %v878
    %v1034 = vunpack.c.l.b16 %v879
    %v1035 = vunpack.c.h.b16 %v879
    %v1036 = vunpack.c.l.b16 %v880
    %v1037 = vunpack.c.h.b16 %v880
    %v1038 = vunpack.c.l.b16 %v881
    %v1039 = vunpack.c.h.b16 %v881
    %v1040 = vunpack.c.l.b16 %v882
    %v1041 = vunpack.c.h.b16 %v882
    %v1042 = vunpack.c.l.b16 %v883
    %v1043 = vunpack.c.h.b16 %v883
    %v1044 = vunpack.c.l.b16 %v884
    %v1045 = vunpack.c.h.b16 %v884
    %v1046 = vunpack.c.l.b16 %v885
    %v1047 = vunpack.c.h.b16 %v885
    %v1048 = vunpack.c.l.b16 %v886
    %v1049 = vunpack.c.h.b16 %v886
    %v1050 = vunpack.c.l.b16 %v887
    %v1051 = vunpack.c.h.b16 %v887
    %v1052 = vunpack.c.l.b16 %v888
    %v1053 = vunpack.c.h.b16 %v888
    %v1054 = vunpack.c.l.b16 %v889
    %v1055 = vunpack.c.h.b16 %v889
    %v1056 = vunpack.c.l.b16 %v890
    %v1057 = vunpack.c.h.b16 %v890
    %v1058 = vunpack.c.l.b16 %v891
    %v1059 = vunpack.c.h.b16 %v891
    %v1060 = vunpack.c.l.b16 %v892
    %v1061 = vunpack.c.h.b16 %v892
    %v1062 = vunpack.c.l.b16 %v893
    %v1063 = vunpack.c.h.b16 %v893
    %v1064 = vunpack.c.l.b16 %v894
    %v1065 = vunpack.c.h.b16 %v894
    %v1066 = vunpack.c.l.b16 %v895
    %v1067 = vunpack.c.h.b16 %v895
    %v1068 = vunpack.c.l.b16 %v896
    %v1069 = vunpack.c.h.b16 %v896
    %v1070 = vunpack.c.l.b16 %v897
    %v1071 = vunpack.c.h.b16 %v897
    %v1072 = vunpack.c.l.b16 %v898
    %v1073 = vunpack.c.h.b16 %v898
    %v1074 = vunpack.c.l.b16 %v899
    %v1075 = vunpack.c.h.b16 %v899
    %v1076 = vunpack.c.l.b16 %v900
    %v1077 = vunpack.c.h.b16 %v900
    %v1078 = vunpack.c.l.b16 %v901
    %v1079 = vunpack.c.h.b16 %v901
    %v1080 = vunpack.c.l.b16 %v902
    %v1081 = vunpack.c.h.b16 %v902
    %v1082 = vunpack.c.l.b16 %v903
    %v1083 = vunpack.c.h.b16 %v903
    %v1084 = vunpack.c.l.b16 %v904
    %v1085 = vunpack.c.h.b16 %v904
    %v1086 = vunpack.c.l.b16 %v905
    %v1087 = vunpack.c.h.b16 %v905
    %v1088 = vunpack.c.l.b16 %v906
    %v1089 = vunpack.c.h.b16 %v906
    %v1090 = vunpack.c.l.b16 %v907
    %v1091 = vunpack.c.h.b16 %v907
    %v1092 = vunpack.c.l.b16 %v908
    %v1093 = vunpack.c.h.b16 %v908
    %v1094 = vunpack.c.l.b16 %v909
    %v1095 = vunpack.c.h.b16 %v909
    %v1096 = vunpack.c.l.b16 %v910
    %v1097 = vunpack.c.h.b16 %v910
    %v1098 = vunpack.c.l.b16 %v911
    %v1099 = vunpack.c.h.b16 %v911
    %v1100 = vunpack.c.l.b16 %v912
    %v1101 = vunpack.c.h.b16 %v912
    %v1102 = vunpack.c.l.b16 %v913
    %v1103 = vunpack.c.h.b16 %v913
    %v1104 = vunpack.c.l.b16 %v914
    %v1105 = vunpack.c.h.b16 %v914
    %v1106 = vunpack.c.l.b16 %v915
    %v1107 = vunpack.c.h.b16 %v915
    %v1108 = vpack.c.b16 %v984, %v980
    %v1109 = vpack.c.b16 %v985, %v981
    %v1110 = vpack.c.b16 %v986, %v982
    %v1111 = vpack.c.b16 %v987, %v983
    %v1112 = vpack.c.b16 %v992, %v988
    %v1113 = vpack.c.b16 %v993, %v989
    %v1114 = vpack.c.b16 %v994, %v990
    %v1115 = vpack.c.b16 %v995, %v991
    %v1116 = vpack.c.b16 %v1000, %v996
    %v1117 = vpack.c.b16 %v1001, %v997
    %v1118 = vpack.c.b16 %v1002, %v998
    %v1119 = vpack.c.b16 %v1003, %v999
    %v1120 = vpack.c.b16 %v1008, %v1004
    %v1121 = vpack.c.b16 %v1009, %v1005
    %v1122 = vpack.c.b16 %v1010, %v1006
    %v1123 = vpack.c.b16 %v1011, %v1007
    %v1124 = vpack.c.b16 %v1016, %v1012
    %v1125 = vpack.c.b16 %v1017, %v1013
    %v1126 = vpack.c.b16 %v1018, %v1014
    %v1127 = vpack.c.b16 %v1019, %v1015
    %v1128 = vpack.c.b16 %v1024, %v1020
    %v1129 = vpack.c.b16 %v1025, %v1021
    %v1130 = vpack.c.b16 %v1026, %v1022
    %v1131 = vpack.c.b16 %v1027, %v1023
    %v1132 = vpack.c.b16 %v1032, %v1028
    %v1133 = vpack.c.b16 %v1033, %v1029
    %v1134 = vpack.c.b16 %v1034, %v1030
    %v1135 = vpack.c.b16 %v1035, %v1031
    %v1136 = vpack.c.b16 %v1040, %v1036
    %v1137 = vpack.c.b16 %v1041, %v1037
    %v1138 = vpack.c.b16 %v1042, %v1038
    %v1139 = vpack.c.b16 %v1043, %v1039
    %v1140 = vpack.c.b16 %v1048, %v1044
    %v1141 = vpack.c.b16 %v1049, %v1045
    %v1142 = vpack.c.b16 %v1050, %v1046
    %v1143 = vpack.c.b16 %v1051, %v1047
    %v1144 = vpack.c.b16 %v1056, %v1052
    %v1145 = vpack.c.b16 %v1057, %v1053
    %v1146 = vpack.c.b16 %v1058, %v1054
    %v1147 = vpack.c.b16 %v1059, %v1055
    %v1148 = vpack.c.b16 %v1064, %v1060
    %v1149 = vpack.c.b16 %v1065, %v1061
    %v1150 = vpack.c.b16 %v1066, %v1062
    %v1151 = vpack.c.b16 %v1067, %v1063
    %v1152 = vpack.c.b16 %v1072, %v1068
    %v1153 = vpack.c.b16 %v1073, %v1069
    %v1154 = vpack.c.b16 %v1074, %v1070
    %v1155 = vpack.c.b16 %v1075, %v1071
    %v1156 = vpack.c.b16 %v1080, %v1076
    %v1157 = vpack.c.b16 %v1081, %v1077
    %v1158 = vpack.c.b16 %v1082, %v1078
    %v1159 = vpack.c.b16 %v1083, %v1079
    %v1160 = vpack.c.b16 %v1088, %v1084
    %v1161 = vpack.c.b16 %v1089, %v1085
    %v1162 = vpack.c.b16 %v1090, %v1086
    %v1163 = vpack.c.b16 %v1091, %v1087
    %v1164 = vpack.c.b16 %v1096, %v1092
    %v1165 = vpack.c.b16 %v1097, %v1093
    %v1166 = vpack.c.b16 %v1098, %v1094
    %v1167 = vpack.c.b16 %v1099, %v1095
    %v1168 = vpack.c.b16 %v1104, %v1100
    %v1169 = vpack.c.b16 %v1105, %v1101
    %v1170 = vpack.c.b16 %v1106, %v1102
    %v1171 = vpack.c.b16 %v1107, %v1103
    %1236 = vmatpush.bf16.msra.mxu0 %v1136
    %1237 = vmatpush.bf16.msra.mxu0 %v1132
    %1238 = vmatpush.bf16.msra.mxu0 %v1128
    %1239 = vmatpush.bf16.msra.mxu0 %v1124
    %1240 = vmatpush.bf16.msra.mxu0 %v1120
    %1241 = vmatpush.bf16.msra.mxu0 %v1116
    %1242 = vmatpush.bf16.msra.mxu0 %v1112
    %1243 = vmatpush.bf16.msra.mxu0 %v1108
    %1244 = vmatmul.bf16.gmra.mxu0 %v848
    %v1245 = vpop.f32.mrf.mxu0
    %v1246 = vadd.f32 0.0, %v1245
    %v1247 = vpop.f32.mrf.mxu0
    %v1248 = vadd.f32 0.0, %v1247
    %1249 = vmatmul.bf16.gmra.mxu0 %v850
    %v1250 = vpop.f32.mrf.mxu0
    %v1251 = vadd.f32 0.0, %v1250
    %v1252 = vpop.f32.mrf.mxu0
    %v1253 = vadd.f32 0.0, %v1252
    %1254 = vdwg.mxu0
    %1255 = vmatpush.bf16.msra.mxu0 %v1168
    %1256 = vmatpush.bf16.msra.mxu0 %v1164
    %1257 = vmatpush.bf16.msra.mxu0 %v1160
    %1258 = vmatpush.bf16.msra.mxu0 %v1156
    %1259 = vmatpush.bf16.msra.mxu0 %v1152
    %1260 = vmatpush.bf16.msra.mxu0 %v1148
    %1261 = vmatpush.bf16.msra.mxu0 %v1144
    %1262 = vmatpush.bf16.msra.mxu0 %v1140
    %1263 = vmatmul.bf16.gmra.mxu0 %v849
    %v1264 = vpop.f32.mrf.mxu0
    %v1265 = vadd.f32 %v1246, %v1264
    %v1266 = vpop.f32.mrf.mxu0
    %v1267 = vadd.f32 %v1248, %v1266
    %1268 = vmatmul.bf16.gmra.mxu0 %v851
    %v1269 = vpop.f32.mrf.mxu0
    %v1270 = vadd.f32 %v1251, %v1269
    %v1271 = vpop.f32.mrf.mxu0
    %v1272 = vadd.f32 %v1253, %v1271
    %1273 = vdwg.mxu0
    %1274 = vmatpush.bf16.msra.mxu0 %v1137
    %1275 = vmatpush.bf16.msra.mxu0 %v1133
    %1276 = vmatpush.bf16.msra.mxu0 %v1129
    %1277 = vmatpush.bf16.msra.mxu0 %v1125
    %1278 = vmatpush.bf16.msra.mxu0 %v1121
    %1279 = vmatpush.bf16.msra.mxu0 %v1117
    %1280 = vmatpush.bf16.msra.mxu0 %v1113
    %1281 = vmatpush.bf16.msra.mxu0 %v1109
    %1282 = vmatmul.bf16.gmra.mxu0 %v848
    %v1283 = vpop.f32.mrf.mxu0
    %v1284 = vadd.f32 0.0, %v1283
    %v1285 = vpop.f32.mrf.mxu0
    %v1286 = vadd.f32 0.0, %v1285
    %1287 = vmatmul.bf16.gmra.mxu0 %v850
    %v1288 = vpop.f32.mrf.mxu0
    %v1289 = vadd.f32 0.0, %v1288
    %v1290 = vpop.f32.mrf.mxu0
    %v1291 = vadd.f32 0.0, %v1290
    %1292 = vdwg.mxu0
    %1293 = vmatpush.bf16.msra.mxu0 %v1169
    %1294 = vmatpush.bf16.msra.mxu0 %v1165
    %1295 = vmatpush.bf16.msra.mxu0 %v1161
    %1296 = vmatpush.bf16.msra.mxu0 %v1157
    %1297 = vmatpush.bf16.msra.mxu0 %v1153
    %1298 = vmatpush.bf16.msra.mxu0 %v1149
    %1299 = vmatpush.bf16.msra.mxu0 %v1145
    %1300 = vmatpush.bf16.msra.mxu0 %v1141
    %1301 = vmatmul.bf16.gmra.mxu0 %v849
    %v1302 = vpop.f32.mrf.mxu0
    %v1303 = vadd.f32 %v1284, %v1302
    %v1304 = vpop.f32.mrf.mxu0
    %v1305 = vadd.f32 %v1286, %v1304
    %1306 = vmatmul.bf16.gmra.mxu0 %v851
    %v1307 = vpop.f32.mrf.mxu0
    %v1308 = vadd.f32 %v1289, %v1307
    %v1309 = vpop.f32.mrf.mxu0
    %v1310 = vadd.f32 %v1291, %v1309
    %1311 = vdwg.mxu0
    %1312 = vmatpush.bf16.msra.mxu0 %v1138
    %1313 = vmatpush.bf16.msra.mxu0 %v1134
    %1314 = vmatpush.bf16.msra.mxu0 %v1130
    %1315 = vmatpush.bf16.msra.mxu0 %v1126
    %1316 = vmatpush.bf16.msra.mxu0 %v1122
    %1317 = vmatpush.bf16.msra.mxu0 %v1118
    %1318 = vmatpush.bf16.msra.mxu0 %v1114
    %1319 = vmatpush.bf16.msra.mxu0 %v1110
    %1320 = vmatmul.bf16.gmra.mxu0 %v848
    %v1321 = vpop.f32.mrf.mxu0
    %v1322 = vadd.f32 0.0, %v1321
    %v1323 = vpop.f32.mrf.mxu0
    %v1324 = vadd.f32 0.0, %v1323
    %1325 = vmatmul.bf16.gmra.mxu0 %v850
    %v1326 = vpop.f32.mrf.mxu0
    %v1327 = vadd.f32 0.0, %v1326
    %v1328 = vpop.f32.mrf.mxu0
    %v1329 = vadd.f32 0.0, %v1328
    %1330 = vdwg.mxu0
    %1331 = vmatpush.bf16.msra.mxu0 %v1170
    %1332 = vmatpush.bf16.msra.mxu0 %v1166
    %1333 = vmatpush.bf16.msra.mxu0 %v1162
    %1334 = vmatpush.bf16.msra.mxu0 %v1158
    %1335 = vmatpush.bf16.msra.mxu0 %v1154
    %1336 = vmatpush.bf16.msra.mxu0 %v1150
    %1337 = vmatpush.bf16.msra.mxu0 %v1146
    %1338 = vmatpush.bf16.msra.mxu0 %v1142
    %1339 = vmatmul.bf16.gmra.mxu0 %v849
    %v1340 = vpop.f32.mrf.mxu0
    %v1341 = vadd.f32 %v1322, %v1340
    %v1342 = vpop.f32.mrf.mxu0
    %v1343 = vadd.f32 %v1324, %v1342
    %1344 = vmatmul.bf16.gmra.mxu0 %v851
    %v1345 = vpop.f32.mrf.mxu0
    %v1346 = vadd.f32 %v1327, %v1345
    %v1347 = vpop.f32.mrf.mxu0
    %v1348 = vadd.f32 %v1329, %v1347
    %1349 = vdwg.mxu0
    %1350 = vmatpush.bf16.msra.mxu0 %v1139
    %1351 = vmatpush.bf16.msra.mxu0 %v1135
    %1352 = vmatpush.bf16.msra.mxu0 %v1131
    %1353 = vmatpush.bf16.msra.mxu0 %v1127
    %1354 = vmatpush.bf16.msra.mxu0 %v1123
    %1355 = vmatpush.bf16.msra.mxu0 %v1119
    %1356 = vmatpush.bf16.msra.mxu0 %v1115
    %1357 = vmatpush.bf16.msra.mxu0 %v1111
    %1358 = vmatmul.bf16.gmra.mxu0 %v848
    %v1359 = vpop.f32.mrf.mxu0
    %v1360 = vadd.f32 0.0, %v1359
    %v1361 = vpop.f32.mrf.mxu0
    %v1362 = vadd.f32 0.0, %v1361
    %1363 = vmatmul.bf16.gmra.mxu0 %v850
    %v1364 = vpop.f32.mrf.mxu0
    %v1365 = vadd.f32 0.0, %v1364
    %v1366 = vpop.f32.mrf.mxu0
    %v1367 = vadd.f32 0.0, %v1366
    %1368 = vdwg.mxu0
    %1369 = vmatpush.bf16.msra.mxu0 %v1171
    %1370 = vmatpush.bf16.msra.mxu0 %v1167
    %1371 = vmatpush.bf16.msra.mxu0 %v1163
    %1372 = vmatpush.bf16.msra.mxu0 %v1159
    %1373 = vmatpush.bf16.msra.mxu0 %v1155
    %1374 = vmatpush.bf16.msra.mxu0 %v1151
    %1375 = vmatpush.bf16.msra.mxu0 %v1147
    %1376 = vmatpush.bf16.msra.mxu0 %v1143
    %1377 = vmatmul.bf16.gmra.mxu0 %v849
    %v1378 = vpop.f32.mrf.mxu0
    %v1379 = vadd.f32 %v1360, %v1378
    %v1380 = vpop.f32.mrf.mxu0
    %v1381 = vadd.f32 %v1362, %v1380
    %1382 = vmatmul.bf16.gmra.mxu0 %v851
    %v1383 = vpop.f32.mrf.mxu0
    %v1384 = vadd.f32 %v1365, %v1383
    %v1385 = vpop.f32.mrf.mxu0
    %v1386 = vadd.f32 %v1367, %v1385
    %1387 = vdwg.mxu0
    %v1388 = vpack.c.bf16 %v1267, %v1265
    %v1389 = vpack.c.bf16 %v1272, %v1270
    %v1390 = vpack.c.bf16 %v1305, %v1303
    %v1391 = vpack.c.bf16 %v1310, %v1308
    %v1392 = vpack.c.bf16 %v1343, %v1341
    %v1393 = vpack.c.bf16 %v1348, %v1346
    %v1394 = vpack.c.bf16 %v1381, %v1379
    %v1395 = vpack.c.bf16 %v1386, %v1384
    %1396 = vmatpush.bf16.msra.mxu0 %v1395
    %1397 = vmatpush.bf16.msra.mxu0 %v1394
    %1398 = vmatpush.bf16.msra.mxu0 %v1393
    %1399 = vmatpush.bf16.msra.mxu0 %v1392
    %1400 = vmatpush.bf16.msra.mxu0 %v1391
    %1401 = vmatpush.bf16.msra.mxu0 %v1390
    %1402 = vmatpush.bf16.msra.mxu0 %v1389
    %1403 = vmatpush.bf16.msra.mxu0 %v1388
    %1404 = vmatmul.bf16.gmra.mxu0 %v663
    %v1405 = vpop.f32.mrf.mxu0
    %v1406 = vadd.f32 0.0, %v1405
    %v1407 = vpop.f32.mrf.mxu0
    %v1408 = vadd.f32 0.0, %v1407
    %1409 = vmatmul.bf16.gmra.mxu0 %v664
    %v1410 = vpop.f32.mrf.mxu0
    %v1411 = vadd.f32 0.0, %v1410
    %v1412 = vpop.f32.mrf.mxu0
    %v1413 = vadd.f32 0.0, %v1412
    %1414 = vdwg.mxu0
    %1415 = vadd.xlane.f32.xlu0 %v1406
    %v1416 = vpop.xlane.xlu0 %1415
    %1417 = vadd.xlane.f32.xlu0 %v1408
    %v1418 = vpop.xlane.xlu0 %1417
    %1419 = vadd.xlane.f32.xlu0 %v1411
    %v1420 = vpop.xlane.xlu0 %1419
    %1421 = vadd.xlane.f32.xlu0 %v1413
    %v1422 = vpop.xlane.xlu0 %1421
    %v1423 = vrcp.pop 128.0
    %v1424 = vmul.f32 128.0, %v1423
    %v1425 = vsub.f32 1.0, %v1424
    %v1426 = vmul.f32 %v1423, %v1425
    %v1427 = vadd.f32 %v1423, %v1426
    %vm1428 = vweird.f32 %v1423
    %v1429 = vsel %vm1428, %v1423, %v1427
    %v1430 = vmul.f32 %v1416, %v1429
    %v1431 = vmul.f32 %v1418, %v1429
    %v1432 = vmul.f32 %v1420, %v1429
    %v1433 = vmul.f32 %v1422, %v1429
    %v1434 = vsub.f32 %v1406, %v1430
    %v1435 = vsub.f32 %v1408, %v1431
    %v1436 = vsub.f32 %v1411, %v1432
    %v1437 = vsub.f32 %v1413, %v1433
    %v1438 = vmul.f32 %v1434, %v1434
    %v1439 = vmul.f32 %v1435, %v1435
    %v1440 = vmul.f32 %v1436, %v1436
    %v1441 = vmul.f32 %v1437, %v1437
    %1442 = vadd.xlane.f32.xlu0 %v1438
    %v1443 = vpop.xlane.xlu0 %1442
    %1444 = vadd.xlane.f32.xlu0 %v1439
    %v1445 = vpop.xlane.xlu0 %1444
    %1446 = vadd.xlane.f32.xlu0 %v1440
    %v1447 = vpop.xlane.xlu0 %1446
    %1448 = vadd.xlane.f32.xlu0 %v1441
    %v1449 = vpop.xlane.xlu0 %1448
    %v1450 = vmul.f32 %v1443, %v1429
    %v1451 = vmul.f32 %v1445, %v1429
    %v1452 = vmul.f32 %v1447, %v1429
    %v1453 = vmul.f32 %v1449, %v1429
    %v1454 = vadd.f32 %v1450, 1e-05
    %v1455 = vadd.f32 %v1451, 1e-05
    %v1456 = vadd.f32 %v1452, 1e-05
    %v1457 = vadd.f32 %v1453, 1e-05
    %v1458 = vrsqrt.pop %v1454
    %v1459 = vmul.f32 %v1458, %v1454
    %v1460 = vmul.f32 %v1459, %v1458
    %v1461 = vmul.f32 0.5, %v1460
    %v1462 = vsub.f32 1.5, %v1461
    %v1463 = vmul.f32 %v1458, %v1462
    %vm1464 = vweird.f32 %v1454
    %vm1465 = vweird.f32 %v1458
    %vm1466 = vmor %vm1464, %vm1465
    %v1467 = vsel %vm1466, %v1458, %v1463
    %v1468 = vrsqrt.pop %v1455
    %v1469 = vmul.f32 %v1468, %v1455
    %v1470 = vmul.f32 %v1469, %v1468
    %v1471 = vmul.f32 0.5, %v1470
    %v1472 = vsub.f32 1.5, %v1471
    %v1473 = vmul.f32 %v1468, %v1472
    %vm1474 = vweird.f32 %v1455
    %vm1475 = vweird.f32 %v1468
    %vm1476 = vmor %vm1474, %vm1475
    %v1477 = vsel %vm1476, %v1468, %v1473
    %v1478 = vrsqrt.pop %v1456
    %v1479 = vmul.f32 %v1478, %v1456
    %v1480 = vmul.f32 %v1479, %v1478
    %v1481 = vmul.f32 0.5, %v1480
    %v1482 = vsub.f32 1.5, %v1481
    %v1483 = vmul.f32 %v1478, %v1482
    %vm1484 = vweird.f32 %v1456
    %vm1485 = vweird.f32 %v1478
    %vm1486 = vmor %vm1484, %vm1485
    %v1487 = vsel %vm1486, %v1478, %v1483
    %v1488 = vrsqrt.pop %v1457
    %v1489 = vmul.f32 %v1488, %v1457
    %v1490 = vmul.f32 %v1489, %v1488
    %v1491 = vmul.f32 0.5, %v1490
    %v1492 = vsub.f32 1.5, %v1491
    %v1493 = vmul.f32 %v1488, %v1492
    %vm1494 = vweird.f32 %v1457
    %vm1495 = vweird.f32 %v1488
    %vm1496 = vmor %vm1494, %vm1495
    %v1497 = vsel %vm1496, %v1488, %v1493
    %v1498 = vmul.f32 %v1434, %v1467
    %v1499 = vmul.f32 %v1435, %v1477
    %v1500 = vmul.f32 %v1436, %v1487
    %v1501 = vmul.f32 %v1437, %v1497
    %v1502 = vld [vmem:[%s6] sm:$0x1]
    %v1504 = vperm.slane %v1502, 0
    %v1506 = vmul.f32 %v1498, %v1504
    %v1507 = vmul.f32 %v1499, %v1504
    %v1508 = vmul.f32 %v1500, %v1504
    %v1509 = vmul.f32 %v1501, %v1504
    %v1510 = vld [vmem:[%s7] sm:$0x1]
    %v1512 = vperm.slane %v1510, 0
    %v1514 = vadd.f32 %v1506, %v1512
    %v1515 = vadd.f32 %v1507, %v1512
    %v1516 = vadd.f32 %v1508, %v1512
    %v1517 = vadd.f32 %v1509, %v1512
    %v1518 = vadd.f32 %v1514, %v97
    %v1519 = vadd.f32 %v1515, %v98
    %v1520 = vadd.f32 %v1516, %v99
    %v1521 = vadd.f32 %v1517, %v100
    %1522 = vst [vmem:[#allocation10] sm:$0xff] %v1518
    %1523 = vst [vmem:[#allocation10 + $0x8] sm:$0xff] %v1519
    %1524 = vst [vmem:[#allocation10 + $0x10] sm:$0xff] %v1520
    %1525 = vst [vmem:[#allocation10 + $0x18] sm:$0xff] %v1521
    // Predicated region
    $region50: #{tpu_custom_call.1} parent=1 // pred_check
      _
    $region51: #{tpu_custom_call.1} parent=1 // pred_check_branch
      %1527 = sbr.rel (0) target = $region53
    $region52: #{tpu_custom_call.1} parent=1 // pred_region
      %1529 = vsyncadd [#allocation4], 0
      %s1530 = sshll.u32 [#allocation10], 4
      %s1531 = int_to_ptr.vmem [resolvable:$true] %s1530
      %s1532 = sshll.u32 %s8, 4
      %s1533 = int_to_ptr.hbm [resolvable:$true] %s1532
      %1538 = dma.vmem_to_hbm [thread:$0]  %s1531, 512, %s1533, [#allocation4], 128, 128, 8
    $region53: #{tpu_custom_call.1} parent=1 // pred_fallthru
      _
    // Predicated region
    $region54: #{tpu_custom_call.1} parent=1 // pred_check
      _
    $region55: #{tpu_custom_call.1} parent=1 // pred_check_branch
      %1540 = sbr.rel (0) target = $region57
    $region56: #{tpu_custom_call.1} parent=1 // pred_region
      %1542 = dma.done [#allocation4], 512
    $region57: #{tpu_custom_call.1} parent=1 // pred_fallthru
      _
    %1543 = vsyncpa [#allocation3], 1
    %1544 = vsyncpa [#allocation6], 1
    %1545 = vsyncpa [#allocation9], 1
    %1546 = vsyncpa [#allocation4], 1

</llo_original>
